<compile_context>
chip_gen: v6e
topology: v6e:2x2x1
jax: 0.10.0
libtpu: 0.0.40
codegen_flags: <defaults>
</compile_context>

<pallas_src>
import functools
import math

import jax
import jax.numpy as jnp
import numpy as np
from jax.experimental import pallas as pl
from jax.experimental.pallas import tpu as pltpu

# ---- module hyper-parameters (small, consistent with the nn.Module) ----
D_MODEL = 32
NHEAD = 4
DIM_FF = 64
HEAD_DIM = D_MODEL // NHEAD
LN_EPS = 1e-5
NEG_INF = -1e30          # stand-in for masked_fill(-inf) in key_padding_mask
W_LANE = 3 * D_MODEL     # 96: lane width of the fused QKV / FFN-hidden path


# --------------------------- fused Pallas kernel ---------------------------

def _decoder_layer_kernel(act_ref, mask_ref, w96_ref, w32_ref,
                          out_ref, attn_ref, *, n, l, s):
    """Whole decoder layer, whole batch, one invocation (everything in VMEM).

    act_ref : (2*n*l + 2*n*s, E) rows = [q_in ; k_in ; v_in ; residual]
    mask_ref: (n, s) additive key-padding bias (0 or NEG_INF)
    w96_ref : (2E+8, 96) rows = [Wqkv ; W1(pad) ; bqkv ; b1(pad) ; bo ; b2 ;
                                 ln2_g ; ln2_b ; ln3_g ; ln3_b]
    w32_ref : (E+96, E) rows = [Wo ; W2(pad)]
    out_ref : (n*l, E)   attn_ref: (n*l, s)
    """
    f32 = jnp.float32
    E, H, Dh = D_MODEL, NHEAD, HEAD_DIM
    nl, ns = n * l, n * s
    scale = 1.0 / math.sqrt(Dh)

    # ---- packed parameter slabs: static sub-block reads --------------------
    wqkv = w96_ref[0:E, :]                      # (E, 3E)  [wq | wk | wv]
    w1p = w96_ref[E:2 * E, :]                   # (E, 96)  cols >= DIM_FF are 0
    brow = w96_ref[2 * E:2 * E + 8, :]          # (8, 96)  bias / LN rows
    bqkv = brow[0:1, :]                         # (1, 3E)
    b1p = brow[1:2, :]                          # (1, 96)  cols >= DIM_FF are 0
    bo = brow[2:3, 0:E]
    b2 = brow[3:4, 0:E]
    ln2g = brow[4:5, 0:E]
    ln2b = brow[5:6, 0:E]
    ln3g = brow[6:7, 0:E]
    ln3b = brow[7:8, 0:E]

    wo = w32_ref[0:E, :]                        # (E, E)
    w2p = w32_ref[E:E + W_LANE, :]              # (96, E) rows >= DIM_FF are 0

    # ---- fused QKV projection: one lane-dense 96-wide MXU pass -------------
    qkv_rows = act_ref[0:nl + 2 * ns, :]        # [q rows ; k rows ; v rows]
    proj = jnp.dot(qkv_rows, wqkv, preferred_element_type=f32) + bqkv

    q_p = proj[0:nl, 0:E] * scale               # (n*l, E) scale applied once
    k_p = proj[nl:nl + ns, E:2 * E]             # (n*s, E)
    v_p = proj[nl + ns:nl + 2 * ns, 2 * E:3 * E]

    q3 = q_p.reshape(n, l, E)                   # leading-dim split: free
    k3 = k_p.reshape(n, s, E)
    v3 = v_p.reshape(n, s, E)
    bias3 = mask_ref[...][:, None, :]           # (n, 1, s) key-pad bias

    # ---- per-head attention (heads unrolled; batch dim = n) ----------------
    tgt2 = None
    attn_acc = None
    for h in range(H):
        lo, hi = h * Dh, (h + 1) * Dh
        sc = jnp.einsum('nld,nsd->nls', q3[:, :, lo:hi], k3[:, :, lo:hi],
                        preferred_element_type=f32) + bias3
        m = jnp.max(sc, axis=-1, keepdims=True)
        p = jnp.exp(sc - m)
        # exact reciprocal keeps the 1e-4 check; approx=True = free EUP slot
        p = p * pl.reciprocal(jnp.sum(p, axis=-1, keepdims=True), approx=False)
        ctx = jnp.einsum('nls,nsd->nld', p, v3[:, :, lo:hi],
                         preferred_element_type=f32)            # (n, l, Dh)
        # out-projection folded per head (sum_h ctx_h @ Wo[h-block])
        part = jnp.dot(ctx.reshape(nl, Dh), wo[lo:hi, :],
                       preferred_element_type=f32)              # (n*l, E)
        tgt2 = part if tgt2 is None else tgt2 + part
        attn_acc = p if attn_acc is None else attn_acc + p
    tgt2 = tgt2 + bo

    # head-averaged attention weights (PyTorch average_attn_weights=True)
    attn_ref[...] = (attn_acc * (1.0 / H)).reshape(nl, s)

    # ---- residual + LN2 + FFN + residual + LN3 (flat row-wise) -------------
    def layernorm(z, g, b):
        mu = jnp.mean(z, axis=-1, keepdims=True)
        zc = z - mu
        var = jnp.mean(zc * zc, axis=-1, keepdims=True)
        return zc * jax.lax.rsqrt(var + LN_EPS) * g + b

    res = act_ref[nl + 2 * ns:2 * nl + 2 * ns, :]               # (n*l, E)
    tgt = layernorm(res + tgt2, ln2g, ln2b)

    # 96-lane FFN: padded columns of w1/b1 are zero -> hidden pad cols are 0,
    # padded rows of w2 are zero -> exact result.
    hid = jnp.maximum(jnp.dot(tgt, w1p, preferred_element_type=f32) + b1p, 0.0)
    ff = jnp.dot(hid, w2p, preferred_element_type=f32) + b2
    out_ref[...] = layernorm(tgt + ff, ln3g, ln3b)


# ----------------------- parameter initialization -----------------------

def init_params(key):
    ks = jax.random.split(key, 20)
    sdev = 0.08

    def w(i, shape):
        return jax.random.normal(ks[i], shape, jnp.float32) * sdev

    return {
        # in-projection (split of torch's (3E, E) in_proj_weight), stored (in, out)
        "wq": w(0, (D_MODEL, D_MODEL)), "bq": w(1, (1, D_MODEL)),
        "wk": w(2, (D_MODEL, D_MODEL)), "bk": w(3, (1, D_MODEL)),
        "wv": w(4, (D_MODEL, D_MODEL)), "bv": w(5, (1, D_MODEL)),
        # out projection
        "wo": w(6, (D_MODEL, D_MODEL)), "bo": w(7, (1, D_MODEL)),
        # feed-forward
        "w1": w(8, (D_MODEL, DIM_FF)), "b1": w(9, (1, DIM_FF)),
        "w2": w(10, (DIM_FF, D_MODEL)), "b2": w(11, (1, D_MODEL)),
        # layer norms
        "ln2_g": jnp.ones((1, D_MODEL), jnp.float32),
        "ln2_b": jnp.zeros((1, D_MODEL), jnp.float32),
        "ln3_g": jnp.ones((1, D_MODEL), jnp.float32),
        "ln3_b": jnp.zeros((1, D_MODEL), jnp.float32),
    }


# ----------------------------- forward pass -----------------------------

def decoder_layer_forward(params, text_feat, visu_feat, visu_mask=None,
                          text_pos=None, visu_pos=None):
    """Pallas implementation of TransformerDecoderLayer.forward_post.

    text_feat: (L, N, E), visu_feat: (S, N, E), visu_mask: (N, S) bool.
    Returns (tgt (L, N, E), attn (N, L, S)).  Dropout = identity (eval mode).
    """
    L, N, E = text_feat.shape
    S = visu_feat.shape[0]
    assert E == D_MODEL

    q_in = text_feat if text_pos is None else text_feat + text_pos
    k_in = visu_feat if visu_pos is None else visu_feat + visu_pos

    # --- one-time layout plumbing (tiny XLA ops): batch-major row slabs ----
    q_flat = jnp.transpose(q_in, (1, 0, 2)).reshape(N * L, E)
    k_flat = jnp.transpose(k_in, (1, 0, 2)).reshape(N * S, E)
    v_flat = jnp.transpose(visu_feat, (1, 0, 2)).reshape(N * S, E)
    res_flat = jnp.transpose(text_feat, (1, 0, 2)).reshape(N * L, E)
    acts = jnp.concatenate([q_flat, k_flat, v_flat, res_flat], axis=0)

    if visu_mask is None:
        mask_bias = jnp.zeros((N, S), jnp.float32)
    else:
        mask_bias = visu_mask.astype(jnp.float32) * NEG_INF

    # --- packed parameter slabs (one 96-wide slab, one 32-wide slab) -------
    def pad_lanes(x, w):
        return jnp.pad(x, ((0, 0), (0, w - x.shape[1])))

    w96 = jnp.concatenate([
        jnp.concatenate([params["wq"], params["wk"], params["wv"]], axis=1),
        pad_lanes(params["w1"], W_LANE),
        jnp.concatenate([params["bq"], params["bk"], params["bv"]], axis=1),
        pad_lanes(params["b1"], W_LANE),
        pad_lanes(params["bo"], W_LANE),
        pad_lanes(params["b2"], W_LANE),
        pad_lanes(params["ln2_g"], W_LANE),
        pad_lanes(params["ln2_b"], W_LANE),
        pad_lanes(params["ln3_g"], W_LANE),
        pad_lanes(params["ln3_b"], W_LANE),
    ], axis=0)                                                   # (2E+8, 96)

    w32 = jnp.concatenate([
        params["wo"],
        jnp.pad(params["w2"], ((0, W_LANE - DIM_FF), (0, 0))),
    ], axis=0)                                                   # (E+96, E)

    kernel = functools.partial(_decoder_layer_kernel, n=N, l=L, s=S)
    vmem = pltpu.MemorySpace.VMEM
    out2d, attn2d = pl.pallas_call(
        kernel,
        out_shape=(jax.ShapeDtypeStruct((N * L, E), jnp.float32),
                   jax.ShapeDtypeStruct((N * L, S), jnp.float32)),
        in_specs=[pl.BlockSpec(memory_space=vmem)] * 4,
        out_specs=(pl.BlockSpec(memory_space=vmem),
                   pl.BlockSpec(memory_space=vmem)),
    )(acts, mask_bias, w96, w32)

    out = jnp.transpose(out2d.reshape(N, L, E), (1, 0, 2))       # (L, N, E)
    return out, attn2d.reshape(N, L, S)


# ------------------------- pure-JAX reference --------------------------

def decoder_layer_reference(params, text_feat, visu_feat, visu_mask,
                            text_pos, visu_pos):
    L, N, E = text_feat.shape
    S = visu_feat.shape[0]
    q_in = text_feat + text_pos if text_pos is not None else text_feat
    k_in = visu_feat + visu_pos if visu_pos is not None else visu_feat

    q = jnp.einsum("lne,ed->lnd", q_in, params["wq"]) + params["bq"][0]
    k = jnp.einsum("sne,ed->snd", k_in, params["wk"]) + params["bk"][0]
    v = jnp.einsum("sne,ed->snd", visu_feat, params["wv"]) + params["bv"][0]

    qh = q.reshape(L, N, NHEAD, HEAD_DIM).transpose(1, 2, 0, 3)  # (N,H,L,Dh)
    kh = k.reshape(S, N, NHEAD, HEAD_DIM).transpose(1, 2, 0, 3)
    vh = v.reshape(S, N, NHEAD, HEAD_DIM).transpose(1, 2, 0, 3)
    s = jnp.einsum("nhld,nhsd->nhls", qh, kh) / math.sqrt(HEAD_DIM)
    if visu_mask is not None:
        s = s + visu_mask.astype(jnp.float32)[:, None, None, :] * NEG_INF
    p = jax.nn.softmax(s, axis=-1)
    ctx = jnp.einsum("nhls,nhsd->nhld", p, vh)                   # (N,H,L,Dh)
    ctx = ctx.transpose(0, 2, 1, 3).reshape(N, L, E)
    tgt2 = ctx @ params["wo"] + params["bo"][0]                  # (N,L,E)

    def ln(x, g, b):
        m = x.mean(-1, keepdims=True)
        var = ((x - m) ** 2).mean(-1, keepdims=True)
        return (x - m) / jnp.sqrt(var + LN_EPS) * g[0] + b[0]

    text_bm = text_feat.transpose(1, 0, 2)
    tgt = ln(text_bm + tgt2, params["ln2_g"], params["ln2_b"])
    ff = jnp.maximum(tgt @ params["w1"] + params["b1"][0], 0.0) @ params["w2"] \
        + params["b2"][0]
    tgt = ln(tgt + ff, params["ln3_g"], params["ln3_b"])
    return tgt.transpose(1, 0, 2), p.mean(axis=1)


# --------------------------------- main ---------------------------------

if __name__ == "__main__":
    key = jax.random.PRNGKey(0)
    kp, k1, k2, k3, k4, k5 = jax.random.split(key, 6)

    L, S, N = 8, 16, 2          # text seq, visual seq, batch
    params = init_params(kp)

    text_feat = jax.random.normal(k1, (L, N, D_MODEL), jnp.float32)
    visu_feat = jax.random.normal(k2, (S, N, D_MODEL), jnp.float32)
    text_pos = jax.random.normal(k3, (L, N, D_MODEL), jnp.float32)
    visu_pos = jax.random.normal(k4, (S, N, D_MODEL), jnp.float32)
    # key_padding_mask: True = ignore that visual token (pad last 3 of batch 1)
    visu_mask = jnp.zeros((N, S), jnp.bool_).at[1, S - 3:].set(True)

    fwd = jax.jit(decoder_layer_forward)
    tgt, attn = fwd(params, text_feat, visu_feat, visu_mask,
                    text_pos, visu_pos)
    jax.block_until_ready((tgt, attn))

    tgt_ref, attn_ref = decoder_layer_reference(
        params, text_feat, visu_feat, visu_mask, text_pos, visu_pos)
    np.testing.assert_allclose(np.asarray(tgt), np.asarray(tgt_ref),
                               rtol=1e-4, atol=1e-4)
    np.testing.assert_allclose(np.asarray(attn), np.asarray(attn_ref),
                               rtol=1e-4, atol=1e-4)

    print("KERNEL_OK")
</pallas_src>

<mosaic_0001>
module attributes {stable_mosaic.version = 11 : i64} {
  func.func @_decoder_layer_kernel(%arg0: memref<96x32xf32, #tpu.memory_space<vmem>>, %arg1: memref<2x16xf32, #tpu.memory_space<vmem>>, %arg2: memref<72x96xf32, #tpu.memory_space<vmem>>, %arg3: memref<128x32xf32, #tpu.memory_space<vmem>>, %arg4: memref<16x32xf32, #tpu.memory_space<vmem>>, %arg5: memref<16x16xf32, #tpu.memory_space<vmem>>) attributes {dimension_semantics = [], scalar_prefetch = 0 : i64, scratch_operands = 0 : i64, tpu.core_type = #tpu.core_type<tc>} {
    %c0 = arith.constant 0 : index
    %c0_0 = arith.constant 0 : index
    %0 = vector.load %arg2[%c0, %c0_0] : memref<72x96xf32, #tpu.memory_space<vmem>>, vector<32x96xf32>
    %c32 = arith.constant 32 : index
    %c0_1 = arith.constant 0 : index
    %1 = vector.load %arg2[%c32, %c0_1] : memref<72x96xf32, #tpu.memory_space<vmem>>, vector<32x96xf32>
    %c64 = arith.constant 64 : index
    %c0_2 = arith.constant 0 : index
    %2 = vector.load %arg2[%c64, %c0_2] : memref<72x96xf32, #tpu.memory_space<vmem>>, vector<8x96xf32>
    %3 = vector.extract_strided_slice %2 {offsets = [0, 0], sizes = [1, 96], strides = [1, 1]} : vector<8x96xf32> to vector<1x96xf32>
    %4 = vector.extract_strided_slice %2 {offsets = [1, 0], sizes = [1, 96], strides = [1, 1]} : vector<8x96xf32> to vector<1x96xf32>
    %5 = vector.extract_strided_slice %2 {offsets = [2, 0], sizes = [1, 32], strides = [1, 1]} : vector<8x96xf32> to vector<1x32xf32>
    %6 = vector.extract_strided_slice %2 {offsets = [3, 0], sizes = [1, 32], strides = [1, 1]} : vector<8x96xf32> to vector<1x32xf32>
    %7 = vector.extract_strided_slice %2 {offsets = [4, 0], sizes = [1, 32], strides = [1, 1]} : vector<8x96xf32> to vector<1x32xf32>
    %8 = vector.extract_strided_slice %2 {offsets = [5, 0], sizes = [1, 32], strides = [1, 1]} : vector<8x96xf32> to vector<1x32xf32>
    %9 = vector.extract_strided_slice %2 {offsets = [6, 0], sizes = [1, 32], strides = [1, 1]} : vector<8x96xf32> to vector<1x32xf32>
    %10 = vector.extract_strided_slice %2 {offsets = [7, 0], sizes = [1, 32], strides = [1, 1]} : vector<8x96xf32> to vector<1x32xf32>
    %c0_3 = arith.constant 0 : index
    %c0_4 = arith.constant 0 : index
    %11 = vector.load %arg3[%c0_3, %c0_4] : memref<128x32xf32, #tpu.memory_space<vmem>>, vector<32x32xf32>
    %c32_5 = arith.constant 32 : index
    %c0_6 = arith.constant 0 : index
    %12 = vector.load %arg3[%c32_5, %c0_6] : memref<128x32xf32, #tpu.memory_space<vmem>>, vector<96x32xf32>
    %c0_7 = arith.constant 0 : index
    %c0_8 = arith.constant 0 : index
    %13 = vector.load %arg0[%c0_7, %c0_8] : memref<96x32xf32, #tpu.memory_space<vmem>>, vector<80x32xf32>
    %cst = arith.constant dense<0.000000e+00> : vector<80x96xf32>
    %14 = tpu.matmul %13, %0, %cst {dimension_numbers = #tpu.dot_dimension_numbers<[1], [0], [0], [1], [0, 0, 1, 1], [], []>} : vector<80x32xf32>, vector<32x96xf32>, vector<80x96xf32> -> vector<80x96xf32>
    %15 = vector.broadcast %3 : vector<1x96xf32> to vector<80x96xf32>
    %16 = arith.addf %14, %15 : vector<80x96xf32>
    %17 = vector.extract_strided_slice %16 {offsets = [0, 0], sizes = [16, 32], strides = [1, 1]} : vector<80x96xf32> to vector<16x32xf32>
    %cst_9 = arith.constant 0.353553385 : f32
    %18 = vector.broadcast %cst_9 : f32 to vector<16x32xf32>
    %19 = arith.mulf %17, %18 : vector<16x32xf32>
    %20 = vector.extract_strided_slice %16 {offsets = [16, 32], sizes = [32, 32], strides = [1, 1]} : vector<80x96xf32> to vector<32x32xf32>
    %21 = vector.extract_strided_slice %16 {offsets = [48, 64], sizes = [32, 32], strides = [1, 1]} : vector<80x96xf32> to vector<32x32xf32>
    %22 = vector.shape_cast %19 : vector<16x32xf32> to vector<2x8x32xf32>
    %23 = vector.shape_cast %20 : vector<32x32xf32> to vector<2x16x32xf32>
    %24 = vector.shape_cast %21 : vector<32x32xf32> to vector<2x16x32xf32>
    %c0_10 = arith.constant 0 : index
    %c0_11 = arith.constant 0 : index
    %25 = vector.load %arg1[%c0_10, %c0_11] : memref<2x16xf32, #tpu.memory_space<vmem>>, vector<2x16xf32>
    %26 = vector.shape_cast %25 : vector<2x16xf32> to vector<2x1x16xf32>
    %27 = vector.extract_strided_slice %22 {offsets = [0, 0, 0], sizes = [2, 8, 8], strides = [1, 1, 1]} : vector<2x8x32xf32> to vector<2x8x8xf32>
    %28 = vector.extract_strided_slice %23 {offsets = [0, 0, 0], sizes = [2, 16, 8], strides = [1, 1, 1]} : vector<2x16x32xf32> to vector<2x16x8xf32>
    "tpu.trace_start"() <{level = 10 : i32, message = "nld,nsd->nls"}> : () -> ()
    %cst_12 = arith.constant dense<0.000000e+00> : vector<2x8x16xf32>
    %29 = tpu.matmul %27, %28, %cst_12 {dimension_numbers = #tpu.dot_dimension_numbers<[2], [2], [1], [1], [0, 0, 0, 1, 1, 1], [0], [0]>} : vector<2x8x8xf32>, vector<2x16x8xf32>, vector<2x8x16xf32> -> vector<2x8x16xf32>
    "tpu.trace_stop"() : () -> ()
    %30 = vector.broadcast %26 : vector<2x1x16xf32> to vector<2x8x16xf32>
    %31 = arith.addf %29, %30 : vector<2x8x16xf32>
    %cst_13 = arith.constant dense<0xFF800000> : vector<2x8xf32>
    %32 = vector.multi_reduction <maximumf>, %31, %cst_13 [2] : vector<2x8x16xf32> to vector<2x8xf32>
    %33 = vector.shape_cast %32 : vector<2x8xf32> to vector<2x8x1xf32>
    %34 = vector.broadcast %33 : vector<2x8x1xf32> to vector<2x8x16xf32>
    %35 = arith.subf %31, %34 : vector<2x8x16xf32>
    %36 = math.exp %35 : vector<2x8x16xf32>
    %cst_14 = arith.constant dense<0.000000e+00> : vector<2x8xf32>
    %37 = vector.multi_reduction <add>, %36, %cst_14 [2] : vector<2x8x16xf32> to vector<2x8xf32>
    %38 = vector.shape_cast %37 : vector<2x8xf32> to vector<2x8x1xf32>
    %39 = tpu.reciprocal %38 : vector<2x8x1xf32> -> vector<2x8x1xf32>
    %40 = vector.broadcast %39 : vector<2x8x1xf32> to vector<2x8x16xf32>
    %41 = arith.mulf %36, %40 : vector<2x8x16xf32>
    %42 = vector.extract_strided_slice %24 {offsets = [0, 0, 0], sizes = [2, 16, 8], strides = [1, 1, 1]} : vector<2x16x32xf32> to vector<2x16x8xf32>
    "tpu.trace_start"() <{level = 10 : i32, message = "nls,nsd->nld"}> : () -> ()
    %cst_15 = arith.constant dense<0.000000e+00> : vector<2x8x8xf32>
    %43 = tpu.matmul %41, %42, %cst_15 {dimension_numbers = #tpu.dot_dimension_numbers<[2], [1], [1], [2], [0, 0, 0, 1, 1, 2], [0], [0]>} : vector<2x8x16xf32>, vector<2x16x8xf32>, vector<2x8x8xf32> -> vector<2x8x8xf32>
    "tpu.trace_stop"() : () -> ()
    %44 = vector.shape_cast %43 : vector<2x8x8xf32> to vector<16x8xf32>
    %45 = vector.extract_strided_slice %11 {offsets = [0, 0], sizes = [8, 32], strides = [1, 1]} : vector<32x32xf32> to vector<8x32xf32>
    %cst_16 = arith.constant dense<0.000000e+00> : vector<16x32xf32>
    %46 = tpu.matmul %44, %45, %cst_16 {dimension_numbers = #tpu.dot_dimension_numbers<[1], [0], [0], [1], [0, 0, 1, 1], [], []>} : vector<16x8xf32>, vector<8x32xf32>, vector<16x32xf32> -> vector<16x32xf32>
    %47 = vector.extract_strided_slice %22 {offsets = [0, 0, 8], sizes = [2, 8, 8], strides = [1, 1, 1]} : vector<2x8x32xf32> to vector<2x8x8xf32>
    %48 = vector.extract_strided_slice %23 {offsets = [0, 0, 8], sizes = [2, 16, 8], strides = [1, 1, 1]} : vector<2x16x32xf32> to vector<2x16x8xf32>
    "tpu.trace_start"() <{level = 10 : i32, message = "nld,nsd->nls"}> : () -> ()
    %cst_17 = arith.constant dense<0.000000e+00> : vector<2x8x16xf32>
    %49 = tpu.matmul %47, %48, %cst_17 {dimension_numbers = #tpu.dot_dimension_numbers<[2], [2], [1], [1], [0, 0, 0, 1, 1, 1], [0], [0]>} : vector<2x8x8xf32>, vector<2x16x8xf32>, vector<2x8x16xf32> -> vector<2x8x16xf32>
    "tpu.trace_stop"() : () -> ()
    %50 = vector.broadcast %26 : vector<2x1x16xf32> to vector<2x8x16xf32>
    %51 = arith.addf %49, %50 : vector<2x8x16xf32>
    %cst_18 = arith.constant dense<0xFF800000> : vector<2x8xf32>
    %52 = vector.multi_reduction <maximumf>, %51, %cst_18 [2] : vector<2x8x16xf32> to vector<2x8xf32>
    %53 = vector.shape_cast %52 : vector<2x8xf32> to vector<2x8x1xf32>
    %54 = vector.broadcast %53 : vector<2x8x1xf32> to vector<2x8x16xf32>
    %55 = arith.subf %51, %54 : vector<2x8x16xf32>
    %56 = math.exp %55 : vector<2x8x16xf32>
    %cst_19 = arith.constant dense<0.000000e+00> : vector<2x8xf32>
    %57 = vector.multi_reduction <add>, %56, %cst_19 [2] : vector<2x8x16xf32> to vector<2x8xf32>
    %58 = vector.shape_cast %57 : vector<2x8xf32> to vector<2x8x1xf32>
    %59 = tpu.reciprocal %58 : vector<2x8x1xf32> -> vector<2x8x1xf32>
    %60 = vector.broadcast %59 : vector<2x8x1xf32> to vector<2x8x16xf32>
    %61 = arith.mulf %56, %60 : vector<2x8x16xf32>
    %62 = vector.extract_strided_slice %24 {offsets = [0, 0, 8], sizes = [2, 16, 8], strides = [1, 1, 1]} : vector<2x16x32xf32> to vector<2x16x8xf32>
    "tpu.trace_start"() <{level = 10 : i32, message = "nls,nsd->nld"}> : () -> ()
    %cst_20 = arith.constant dense<0.000000e+00> : vector<2x8x8xf32>
    %63 = tpu.matmul %61, %62, %cst_20 {dimension_numbers = #tpu.dot_dimension_numbers<[2], [1], [1], [2], [0, 0, 0, 1, 1, 2], [0], [0]>} : vector<2x8x16xf32>, vector<2x16x8xf32>, vector<2x8x8xf32> -> vector<2x8x8xf32>
    "tpu.trace_stop"() : () -> ()
    %64 = vector.shape_cast %63 : vector<2x8x8xf32> to vector<16x8xf32>
    %65 = vector.extract_strided_slice %11 {offsets = [8, 0], sizes = [8, 32], strides = [1, 1]} : vector<32x32xf32> to vector<8x32xf32>
    %cst_21 = arith.constant dense<0.000000e+00> : vector<16x32xf32>
    %66 = tpu.matmul %64, %65, %cst_21 {dimension_numbers = #tpu.dot_dimension_numbers<[1], [0], [0], [1], [0, 0, 1, 1], [], []>} : vector<16x8xf32>, vector<8x32xf32>, vector<16x32xf32> -> vector<16x32xf32>
    %67 = arith.addf %46, %66 : vector<16x32xf32>
    %68 = arith.addf %41, %61 : vector<2x8x16xf32>
    %69 = vector.extract_strided_slice %22 {offsets = [0, 0, 16], sizes = [2, 8, 8], strides = [1, 1, 1]} : vector<2x8x32xf32> to vector<2x8x8xf32>
    %70 = vector.extract_strided_slice %23 {offsets = [0, 0, 16], sizes = [2, 16, 8], strides = [1, 1, 1]} : vector<2x16x32xf32> to vector<2x16x8xf32>
    "tpu.trace_start"() <{level = 10 : i32, message = "nld,nsd->nls"}> : () -> ()
    %cst_22 = arith.constant dense<0.000000e+00> : vector<2x8x16xf32>
    %71 = tpu.matmul %69, %70, %cst_22 {dimension_numbers = #tpu.dot_dimension_numbers<[2], [2], [1], [1], [0, 0, 0, 1, 1, 1], [0], [0]>} : vector<2x8x8xf32>, vector<2x16x8xf32>, vector<2x8x16xf32> -> vector<2x8x16xf32>
    "tpu.trace_stop"() : () -> ()
    %72 = vector.broadcast %26 : vector<2x1x16xf32> to vector<2x8x16xf32>
    %73 = arith.addf %71, %72 : vector<2x8x16xf32>
    %cst_23 = arith.constant dense<0xFF800000> : vector<2x8xf32>
    %74 = vector.multi_reduction <maximumf>, %73, %cst_23 [2] : vector<2x8x16xf32> to vector<2x8xf32>
    %75 = vector.shape_cast %74 : vector<2x8xf32> to vector<2x8x1xf32>
    %76 = vector.broadcast %75 : vector<2x8x1xf32> to vector<2x8x16xf32>
    %77 = arith.subf %73, %76 : vector<2x8x16xf32>
    %78 = math.exp %77 : vector<2x8x16xf32>
    %cst_24 = arith.constant dense<0.000000e+00> : vector<2x8xf32>
    %79 = vector.multi_reduction <add>, %78, %cst_24 [2] : vector<2x8x16xf32> to vector<2x8xf32>
    %80 = vector.shape_cast %79 : vector<2x8xf32> to vector<2x8x1xf32>
    %81 = tpu.reciprocal %80 : vector<2x8x1xf32> -> vector<2x8x1xf32>
    %82 = vector.broadcast %81 : vector<2x8x1xf32> to vector<2x8x16xf32>
    %83 = arith.mulf %78, %82 : vector<2x8x16xf32>
    %84 = vector.extract_strided_slice %24 {offsets = [0, 0, 16], sizes = [2, 16, 8], strides = [1, 1, 1]} : vector<2x16x32xf32> to vector<2x16x8xf32>
    "tpu.trace_start"() <{level = 10 : i32, message = "nls,nsd->nld"}> : () -> ()
    %cst_25 = arith.constant dense<0.000000e+00> : vector<2x8x8xf32>
    %85 = tpu.matmul %83, %84, %cst_25 {dimension_numbers = #tpu.dot_dimension_numbers<[2], [1], [1], [2], [0, 0, 0, 1, 1, 2], [0], [0]>} : vector<2x8x16xf32>, vector<2x16x8xf32>, vector<2x8x8xf32> -> vector<2x8x8xf32>
    "tpu.trace_stop"() : () -> ()
    %86 = vector.shape_cast %85 : vector<2x8x8xf32> to vector<16x8xf32>
    %87 = vector.extract_strided_slice %11 {offsets = [16, 0], sizes = [8, 32], strides = [1, 1]} : vector<32x32xf32> to vector<8x32xf32>
    %cst_26 = arith.constant dense<0.000000e+00> : vector<16x32xf32>
    %88 = tpu.matmul %86, %87, %cst_26 {dimension_numbers = #tpu.dot_dimension_numbers<[1], [0], [0], [1], [0, 0, 1, 1], [], []>} : vector<16x8xf32>, vector<8x32xf32>, vector<16x32xf32> -> vector<16x32xf32>
    %89 = arith.addf %67, %88 : vector<16x32xf32>
    %90 = arith.addf %68, %83 : vector<2x8x16xf32>
    %91 = vector.extract_strided_slice %22 {offsets = [0, 0, 24], sizes = [2, 8, 8], strides = [1, 1, 1]} : vector<2x8x32xf32> to vector<2x8x8xf32>
    %92 = vector.extract_strided_slice %23 {offsets = [0, 0, 24], sizes = [2, 16, 8], strides = [1, 1, 1]} : vector<2x16x32xf32> to vector<2x16x8xf32>
    "tpu.trace_start"() <{level = 10 : i32, message = "nld,nsd->nls"}> : () -> ()
    %cst_27 = arith.constant dense<0.000000e+00> : vector<2x8x16xf32>
    %93 = tpu.matmul %91, %92, %cst_27 {dimension_numbers = #tpu.dot_dimension_numbers<[2], [2], [1], [1], [0, 0, 0, 1, 1, 1], [0], [0]>} : vector<2x8x8xf32>, vector<2x16x8xf32>, vector<2x8x16xf32> -> vector<2x8x16xf32>
    "tpu.trace_stop"() : () -> ()
    %94 = vector.broadcast %26 : vector<2x1x16xf32> to vector<2x8x16xf32>
    %95 = arith.addf %93, %94 : vector<2x8x16xf32>
    %cst_28 = arith.constant dense<0xFF800000> : vector<2x8xf32>
    %96 = vector.multi_reduction <maximumf>, %95, %cst_28 [2] : vector<2x8x16xf32> to vector<2x8xf32>
    %97 = vector.shape_cast %96 : vector<2x8xf32> to vector<2x8x1xf32>
    %98 = vector.broadcast %97 : vector<2x8x1xf32> to vector<2x8x16xf32>
    %99 = arith.subf %95, %98 : vector<2x8x16xf32>
    %100 = math.exp %99 : vector<2x8x16xf32>
    %cst_29 = arith.constant dense<0.000000e+00> : vector<2x8xf32>
    %101 = vector.multi_reduction <add>, %100, %cst_29 [2] : vector<2x8x16xf32> to vector<2x8xf32>
    %102 = vector.shape_cast %101 : vector<2x8xf32> to vector<2x8x1xf32>
    %103 = tpu.reciprocal %102 : vector<2x8x1xf32> -> vector<2x8x1xf32>
    %104 = vector.broadcast %103 : vector<2x8x1xf32> to vector<2x8x16xf32>
    %105 = arith.mulf %100, %104 : vector<2x8x16xf32>
    %106 = vector.extract_strided_slice %24 {offsets = [0, 0, 24], sizes = [2, 16, 8], strides = [1, 1, 1]} : vector<2x16x32xf32> to vector<2x16x8xf32>
    "tpu.trace_start"() <{level = 10 : i32, message = "nls,nsd->nld"}> : () -> ()
    %cst_30 = arith.constant dense<0.000000e+00> : vector<2x8x8xf32>
    %107 = tpu.matmul %105, %106, %cst_30 {dimension_numbers = #tpu.dot_dimension_numbers<[2], [1], [1], [2], [0, 0, 0, 1, 1, 2], [0], [0]>} : vector<2x8x16xf32>, vector<2x16x8xf32>, vector<2x8x8xf32> -> vector<2x8x8xf32>
    "tpu.trace_stop"() : () -> ()
    %108 = vector.shape_cast %107 : vector<2x8x8xf32> to vector<16x8xf32>
    %109 = vector.extract_strided_slice %11 {offsets = [24, 0], sizes = [8, 32], strides = [1, 1]} : vector<32x32xf32> to vector<8x32xf32>
    %cst_31 = arith.constant dense<0.000000e+00> : vector<16x32xf32>
    %110 = tpu.matmul %108, %109, %cst_31 {dimension_numbers = #tpu.dot_dimension_numbers<[1], [0], [0], [1], [0, 0, 1, 1], [], []>} : vector<16x8xf32>, vector<8x32xf32>, vector<16x32xf32> -> vector<16x32xf32>
    %111 = arith.addf %89, %110 : vector<16x32xf32>
    %112 = arith.addf %90, %105 : vector<2x8x16xf32>
    %113 = vector.broadcast %5 : vector<1x32xf32> to vector<16x32xf32>
    %114 = arith.addf %111, %113 : vector<16x32xf32>
    %cst_32 = arith.constant 2.500000e-01 : f32
    %115 = vector.broadcast %cst_32 : f32 to vector<2x8x16xf32>
    %116 = arith.mulf %112, %115 : vector<2x8x16xf32>
    %117 = vector.shape_cast %116 : vector<2x8x16xf32> to vector<16x16xf32>
    %c0_33 = arith.constant 0 : index
    %c0_34 = arith.constant 0 : index
    %118 = vector.load %arg5[%c0_33, %c0_34] : memref<16x16xf32, #tpu.memory_space<vmem>>, vector<16x16xf32>
    tpu.vector_store %arg5[%c0_33, %c0_34], %117 {strides = array<i32>} : memref<16x16xf32, #tpu.memory_space<vmem>>, vector<16x16xf32>,
    %c80 = arith.constant 80 : index
    %c0_35 = arith.constant 0 : index
    %119 = vector.load %arg0[%c80, %c0_35] : memref<96x32xf32, #tpu.memory_space<vmem>>, vector<16x32xf32>
    %120 = arith.addf %119, %114 : vector<16x32xf32>
    %cst_36 = arith.constant dense<0.000000e+00> : vector<16xf32>
    %121 = vector.multi_reduction <add>, %120, %cst_36 [1] : vector<16x32xf32> to vector<16xf32>
    %122 = vector.shape_cast %121 : vector<16xf32> to vector<16x1xf32>
    %cst_37 = arith.constant 3.200000e+01 : f32
    %123 = vector.broadcast %cst_37 : f32 to vector<16x1xf32>
    %124 = arith.divf %122, %123 : vector<16x1xf32>
    %125 = vector.broadcast %124 : vector<16x1xf32> to vector<16x32xf32>
    %126 = arith.subf %120, %125 : vector<16x32xf32>
    %127 = arith.mulf %126, %126 : vector<16x32xf32>
    %cst_38 = arith.constant dense<0.000000e+00> : vector<16xf32>
    %128 = vector.multi_reduction <add>, %127, %cst_38 [1] : vector<16x32xf32> to vector<16xf32>
    %129 = vector.shape_cast %128 : vector<16xf32> to vector<16x1xf32>
    %cst_39 = arith.constant 3.200000e+01 : f32
    %130 = vector.broadcast %cst_39 : f32 to vector<16x1xf32>
    %131 = arith.divf %129, %130 : vector<16x1xf32>
    %cst_40 = arith.constant 9.99999974E-6 : f32
    %132 = vector.broadcast %cst_40 : f32 to vector<16x1xf32>
    %133 = arith.addf %131, %132 : vector<16x1xf32>
    %134 = math.rsqrt %133 : vector<16x1xf32>
    %135 = vector.broadcast %134 : vector<16x1xf32> to vector<16x32xf32>
    %136 = arith.mulf %126, %135 : vector<16x32xf32>
    %137 = vector.broadcast %7 : vector<1x32xf32> to vector<16x32xf32>
    %138 = arith.mulf %136, %137 : vector<16x32xf32>
    %139 = vector.broadcast %8 : vector<1x32xf32> to vector<16x32xf32>
    %140 = arith.addf %138, %139 : vector<16x32xf32>
    %cst_41 = arith.constant dense<0.000000e+00> : vector<16x96xf32>
    %141 = tpu.matmul %140, %1, %cst_41 {dimension_numbers = #tpu.dot_dimension_numbers<[1], [0], [0], [1], [0, 0, 1, 1], [], []>} : vector<16x32xf32>, vector<32x96xf32>, vector<16x96xf32> -> vector<16x96xf32>
    %142 = vector.broadcast %4 : vector<1x96xf32> to vector<16x96xf32>
    %143 = arith.addf %141, %142 : vector<16x96xf32>
    %cst_42 = arith.constant 0.000000e+00 : f32
    %144 = vector.broadcast %cst_42 : f32 to vector<16x96xf32>
    %145 = arith.maximumf %143, %144 : vector<16x96xf32>
    %cst_43 = arith.constant dense<0.000000e+00> : vector<16x32xf32>
    %146 = tpu.matmul %145, %12, %cst_43 {dimension_numbers = #tpu.dot_dimension_numbers<[1], [0], [0], [1], [0, 0, 1, 1], [], []>} : vector<16x96xf32>, vector<96x32xf32>, vector<16x32xf32> -> vector<16x32xf32>
    %147 = vector.broadcast %6 : vector<1x32xf32> to vector<16x32xf32>
    %148 = arith.addf %146, %147 : vector<16x32xf32>
    %149 = arith.addf %140, %148 : vector<16x32xf32>
    %cst_44 = arith.constant dense<0.000000e+00> : vector<16xf32>
    %150 = vector.multi_reduction <add>, %149, %cst_44 [1] : vector<16x32xf32> to vector<16xf32>
    %151 = vector.shape_cast %150 : vector<16xf32> to vector<16x1xf32>
    %cst_45 = arith.constant 3.200000e+01 : f32
    %152 = vector.broadcast %cst_45 : f32 to vector<16x1xf32>
    %153 = arith.divf %151, %152 : vector<16x1xf32>
    %154 = vector.broadcast %153 : vector<16x1xf32> to vector<16x32xf32>
    %155 = arith.subf %149, %154 : vector<16x32xf32>
    %156 = arith.mulf %155, %155 : vector<16x32xf32>
    %cst_46 = arith.constant dense<0.000000e+00> : vector<16xf32>
    %157 = vector.multi_reduction <add>, %156, %cst_46 [1] : vector<16x32xf32> to vector<16xf32>
    %158 = vector.shape_cast %157 : vector<16xf32> to vector<16x1xf32>
    %cst_47 = arith.constant 3.200000e+01 : f32
    %159 = vector.broadcast %cst_47 : f32 to vector<16x1xf32>
    %160 = arith.divf %158, %159 : vector<16x1xf32>
    %cst_48 = arith.constant 9.99999974E-6 : f32
    %161 = vector.broadcast %cst_48 : f32 to vector<16x1xf32>
    %162 = arith.addf %160, %161 : vector<16x1xf32>
    %163 = math.rsqrt %162 : vector<16x1xf32>
    %164 = vector.broadcast %163 : vector<16x1xf32> to vector<16x32xf32>
    %165 = arith.mulf %155, %164 : vector<16x32xf32>
    %166 = vector.broadcast %9 : vector<1x32xf32> to vector<16x32xf32>
    %167 = arith.mulf %165, %166 : vector<16x32xf32>
    %168 = vector.broadcast %10 : vector<1x32xf32> to vector<16x32xf32>
    %169 = arith.addf %167, %168 : vector<16x32xf32>
    %c0_49 = arith.constant 0 : index
    %c0_50 = arith.constant 0 : index
    %170 = vector.load %arg4[%c0_49, %c0_50] : memref<16x32xf32, #tpu.memory_space<vmem>>, vector<16x32xf32>
    tpu.vector_store %arg4[%c0_49, %c0_50], %169 {strides = array<i32>} : memref<16x32xf32, #tpu.memory_space<vmem>>, vector<16x32xf32>,
    return
  }
}

</mosaic_0001>

<llo_original>
// kernel: decoder_layer_forward.1
$region0: #{decoder_layer_forward.1}
  #allocation0 [shape = 'u32[]', space=smem, size = 0x4, offset = 0x4, fixed_abs, tag = 'smem constant byte address 0x4 - core index']
  #allocation1 [shape = 'u32[144,128]{1,0:T(1,128)}', space=vmem, size = 0x12000, scoped, tag = 'internal scratch']
  %s0 = inlined_call_operand.vmem [shape: f32[96,32], index: 0, kind: input, shape index: {}]
  %s1 = inlined_call_operand.vmem [shape: f32[2,16], index: 1, kind: input, shape index: {}]
  %s2 = inlined_call_operand.vmem [shape: f32[72,96], index: 2, kind: input, shape index: {}]
  %s3 = inlined_call_operand.vmem [shape: f32[128,32], index: 3, kind: input, shape index: {}]
  %s4 = inlined_call_operand.vmem [shape: f32[16,32], index: 4, kind: output, shape index: {0}]
  %s5 = inlined_call_operand.hbm [shape: f32[16,16], index: 5, kind: output, shape index: {1}]
  %6 = xla_tuple %s4, %s5
  %s7 = sld [smem:[#allocation0]]
  $region34: #{decoder_layer_forward.1} parent=0
    _
  %s9 = ssub.s32 1, %s7
  %s10 = scalar_select 0, %s9, %s7
  $region1: #{decoder_layer_forward.1} parent=0
    #allocation2 [shape = 'u8[8192]{0}', space=vmem, size = 0x2000, scoped, tag = 'output window, operand 1, single buffered']
    #allocation3 [shape = 's32[1]{0}', space=sflag, size = 0x4, scoped, tag = 'scoped memory for decoder_layer_forward.1']
    %11 = vsyncpa [#allocation3], 0
    // Predicated region
    $region2: #{decoder_layer_forward.1} parent=1 // pred_check
      _
    $region3: #{decoder_layer_forward.1} parent=1 // pred_check_branch
      %13 = sbr.rel (0) target = $region5
    $region4: #{decoder_layer_forward.1} parent=1 // pred_region
      _
    $region5: #{decoder_layer_forward.1} parent=1 // pred_fallthru
      _
    // Predicated region
    $region6: #{decoder_layer_forward.1} parent=1 // pred_check
      _
    $region7: #{decoder_layer_forward.1} parent=1 // pred_check_branch
      %15 = sbr.rel (0) target = $region9
    $region8: #{decoder_layer_forward.1} parent=1 // pred_region
      _
    $region9: #{decoder_layer_forward.1} parent=1 // pred_fallthru
      _
    // Predicated region
    $region10: #{decoder_layer_forward.1} parent=1 // pred_check
      _
    $region11: #{decoder_layer_forward.1} parent=1 // pred_check_branch
      %17 = sbr.rel (0) target = $region13
    $region12: #{decoder_layer_forward.1} parent=1 // pred_region
      _
    $region13: #{decoder_layer_forward.1} parent=1 // pred_fallthru
      _
    // Predicated region
    $region14: #{decoder_layer_forward.1} parent=1 // pred_check
      _
    $region15: #{decoder_layer_forward.1} parent=1 // pred_check_branch
      %19 = sbr.rel (0) target = $region17
    $region16: #{decoder_layer_forward.1} parent=1 // pred_region
      _
    $region17: #{decoder_layer_forward.1} parent=1 // pred_fallthru
      _
    %v20 = vld [vmem:[%s2] sm:$0xff]
    %v21 = vld [vmem:[%s2 + $0x8] sm:$0xff]
    %v22 = vld [vmem:[%s2 + $0x10] sm:$0xff]
    %v23 = vld [vmem:[%s2 + $0x18] sm:$0xff]
    %v24 = vld [vmem:[%s2 + $0x20] sm:$0xff]
    %v25 = vld [vmem:[%s2 + $0x28] sm:$0xff]
    %v26 = vld [vmem:[%s2 + $0x30] sm:$0xff]
    %v27 = vld [vmem:[%s2 + $0x38] sm:$0xff]
    %v28 = vld [vmem:[%s2 + $0x40] sm:$0xff]
    %v29 = vld [vmem:[%s3] sm:$0xff]
    %v30 = vld [vmem:[%s3 + $0x8] sm:$0xff]
    %v31 = vld [vmem:[%s3 + $0x10] sm:$0xff]
    %v32 = vld [vmem:[%s3 + $0x18] sm:$0xff]
    %v33 = vld [vmem:[%s3 + $0x20] sm:$0xff]
    %v34 = vld [vmem:[%s3 + $0x28] sm:$0xff]
    %v35 = vld [vmem:[%s3 + $0x30] sm:$0xff]
    %v36 = vld [vmem:[%s3 + $0x38] sm:$0xff]
    %v37 = vld [vmem:[%s3 + $0x40] sm:$0xff]
    %v38 = vld [vmem:[%s3 + $0x48] sm:$0xff]
    %v39 = vld [vmem:[%s3 + $0x50] sm:$0xff]
    %v40 = vld [vmem:[%s3 + $0x58] sm:$0xff]
    %v41 = vld [vmem:[%s3 + $0x60] sm:$0xff]
    %v42 = vld [vmem:[%s3 + $0x68] sm:$0xff]
    %v43 = vld [vmem:[%s3 + $0x70] sm:$0xff]
    %v44 = vld [vmem:[%s3 + $0x78] sm:$0xff]
    %v45 = vld [vmem:[%s0] sm:$0xff]
    %v46 = vld [vmem:[%s0 + $0x8] sm:$0xff]
    %v47 = vld [vmem:[%s0 + $0x10] sm:$0xff]
    %v48 = vld [vmem:[%s0 + $0x18] sm:$0xff]
    %v49 = vld [vmem:[%s0 + $0x20] sm:$0xff]
    %v50 = vld [vmem:[%s0 + $0x28] sm:$0xff]
    %v51 = vld [vmem:[%s0 + $0x30] sm:$0xff]
    %v52 = vld [vmem:[%s0 + $0x38] sm:$0xff]
    %v53 = vld [vmem:[%s0 + $0x40] sm:$0xff]
    %v54 = vld [vmem:[%s0 + $0x48] sm:$0xff]
    %v55 = vlaneseq
    %v56 = vshrl.u32 %v55, 7
    %v57 = vsub.s32 0, %v56
    %v58 = vrot.slane %v28, %v57
    %vm59 = vcmask 261120
    %v61 = vsel %vm59, %v45, 0
    %v64 = vsel %vm59, %v46, 0
    %v67 = vsel %vm59, %v47, 0
    %v70 = vsel %vm59, %v48, 0
    %v73 = vsel %vm59, %v49, 0
    %v76 = vsel %vm59, %v50, 0
    %v79 = vsel %vm59, %v51, 0
    %v82 = vsel %vm59, %v52, 0
    %v85 = vsel %vm59, %v53, 0
    %v88 = vsel %vm59, %v54, 0
    %90 = vmatprep.subr.mxu0 0.0
    %91 = vmatpush1.msra.mxu0 0.0
    %92 = vmatprep.subr.mxu0 0.0
    %93 = vmatpush1.msra.mxu0 0.0
    %94 = vmatprep.subr.mxu0 0.0
    %95 = vmatpush1.msra.mxu0 0.0
    %96 = vmatprep.subr.mxu0 0.0
    %97 = vmatpush1.msra.mxu0 0.0
    %98 = vmatprep.subr.mxu0 0.0
    %99 = vmatpush1.msra.mxu0 0.0
    %100 = vmatprep.subr.mxu0 0.0
    %101 = vmatpush1.msra.mxu0 0.0
    %102 = vmatprep.subr.mxu0 0.0
    %103 = vmatpush1.msra.mxu0 0.0
    %104 = vmatprep.subr.mxu0 0.0
    %105 = vmatpush1.msra.mxu0 0.0
    %106 = vmatprep.subr.mxu0 0.0
    %107 = vmatpush1.msra.mxu0 0.0
    %108 = vmatprep.subr.mxu0 0.0
    %109 = vmatpush1.msra.mxu0 0.0
    %110 = vmatprep.subr.mxu0 0.0
    %111 = vmatpush1.msra.mxu0 0.0
    %112 = vmatprep.subr.mxu0 0.0
    %113 = vmatpush1.msra.mxu0 0.0
    %114 = vmatprep.subr.mxu0 0.0
    %115 = vmatpush1.msra.mxu0 %v23
    %116 = vmatprep.subr.mxu0 0.0
    %117 = vmatpush1.msra.mxu0 %v22
    %118 = vmatprep.subr.mxu0 0.0
    %119 = vmatpush1.msra.mxu0 %v21
    %120 = vmatprep.subr.mxu0 0.0
    %121 = vmatpush1.msra.mxu0 %v20
    %122 = vmatprep.subr.mxu0 0.0
    %123 = vmatpush2.msra.mxu0 0.0
    %124 = vmatprep.subr.mxu0 0.0
    %125 = vmatpush2.msra.mxu0 0.0
    %126 = vmatprep.subr.mxu0 0.0
    %127 = vmatpush2.msra.mxu0 0.0
    %128 = vmatprep.subr.mxu0 0.0
    %129 = vmatpush2.msra.mxu0 0.0
    %130 = vmatprep.subr.mxu0 0.0
    %131 = vmatpush2.msra.mxu0 0.0
    %132 = vmatprep.subr.mxu0 0.0
    %133 = vmatpush2.msra.mxu0 0.0
    %134 = vmatprep.subr.mxu0 0.0
    %135 = vmatpush2.msra.mxu0 0.0
    %136 = vmatprep.subr.mxu0 0.0
    %137 = vmatpush2.msra.mxu0 0.0
    %138 = vmatprep.subr.mxu0 0.0
    %139 = vmatpush2.msra.mxu0 0.0
    %140 = vmatprep.subr.mxu0 0.0
    %141 = vmatpush2.msra.mxu0 0.0
    %142 = vmatprep.subr.mxu0 0.0
    %143 = vmatpush2.msra.mxu0 0.0
    %144 = vmatprep.subr.mxu0 0.0
    %145 = vmatpush2.msra.mxu0 0.0
    %146 = vmatprep.subr.mxu0 0.0
    %147 = vmatpush2.msra.mxu0 0.0
    %148 = vmatprep.subr.mxu0 0.0
    %149 = vmatpush2.msra.mxu0 0.0
    %150 = vmatprep.subr.mxu0 0.0
    %151 = vmatpush2.msra.mxu0 0.0
    %152 = vmatprep.subr.mxu0 0.0
    %153 = vmatpush2.msra.mxu0 0.0
    %154 = vmatprep.mubr.f32.mxu0 0.0
    %155 = vmatmul.mubr.f32.gmra.mxu0 %v61
    %v156 = vpop.f32.mrf.mxu0
    %v157 = vadd.f32 %v58, %v156
    %v158 = vpop.f32.mrf.mxu0
    %159 = vmatprep.mubr.f32.mxu0 0.0
    %160 = vmatmul.mubr.f32.gmra.mxu0 %v64
    %v161 = vpop.f32.mrf.mxu0
    %v162 = vadd.f32 %v58, %v161
    %v163 = vpop.f32.mrf.mxu0
    %164 = vmatprep.mubr.f32.mxu0 0.0
    %165 = vmatmul.mubr.f32.gmra.mxu0 %v67
    %v166 = vpop.f32.mrf.mxu0
    %v167 = vadd.f32 %v58, %v166
    %v168 = vpop.f32.mrf.mxu0
    %169 = vmatprep.mubr.f32.mxu0 0.0
    %170 = vmatmul.mubr.f32.gmra.mxu0 %v70
    %v171 = vpop.f32.mrf.mxu0
    %v172 = vadd.f32 %v58, %v171
    %v173 = vpop.f32.mrf.mxu0
    %174 = vmatprep.mubr.f32.mxu0 0.0
    %175 = vmatmul.mubr.f32.gmra.mxu0 %v73
    %v176 = vpop.f32.mrf.mxu0
    %v177 = vadd.f32 %v58, %v176
    %v178 = vpop.f32.mrf.mxu0
    %179 = vmatprep.mubr.f32.mxu0 0.0
    %180 = vmatmul.mubr.f32.gmra.mxu0 %v76
    %v181 = vpop.f32.mrf.mxu0
    %v182 = vadd.f32 %v58, %v181
    %v183 = vpop.f32.mrf.mxu0
    %184 = vmatprep.mubr.f32.mxu0 0.0
    %185 = vmatmul.mubr.f32.gmra.mxu0 %v79
    %v186 = vpop.f32.mrf.mxu0
    %v187 = vadd.f32 %v58, %v186
    %v188 = vpop.f32.mrf.mxu0
    %189 = vmatprep.mubr.f32.mxu0 0.0
    %190 = vmatmul.mubr.f32.gmra.mxu0 %v82
    %v191 = vpop.f32.mrf.mxu0
    %v192 = vadd.f32 %v58, %v191
    %v193 = vpop.f32.mrf.mxu0
    %194 = vmatprep.mubr.f32.mxu0 0.0
    %195 = vmatmul.mubr.f32.gmra.mxu0 %v85
    %v196 = vpop.f32.mrf.mxu0
    %v197 = vadd.f32 %v58, %v196
    %v198 = vpop.f32.mrf.mxu0
    %199 = vmatprep.mubr.f32.mxu0 0.0
    %200 = vmatmul.mubr.f32.gmra.mxu0 %v88
    %v201 = vpop.f32.mrf.mxu0
    %v202 = vadd.f32 %v58, %v201
    %v203 = vpop.f32.mrf.mxu0
    %204 = vdwg.mxu0
    %v205 = vmul.f32 %v157, 0.35355338
    %v206 = vmul.f32 %v162, 0.35355338
    %v207 = vld [vmem:[%s1] sm:$0x3]
    %v210 = vunpack.c.l.s4 1966171168
    %v211 = vunpack.c.0.s8 %v210
    %v212 = vlaneseq
    %v213 = vshrl.u32 %v212, 7
    %v214 = vsub.s32 %v211, %v213
    %v215 = vrot.slane %v207, %v214
    %v216 = vcombine.high %v215, %v215
    %v218 = vunpack.c.l.s4 1966171168
    %v219 = vunpack.c.0.s8 %v218
    %v220 = vlaneseq
    %v221 = vshrl.u32 %v220, 7
    %v222 = vsub.s32 %v219, %v221
    %v223 = vrot.slane %v215, %v222
    %v225 = vunpack.c.l.s4 1966171168
    %v226 = vunpack.c.0.s8 %v225
    %v227 = vlaneseq
    %v228 = vshrl.u32 %v227, 7
    %v229 = vsub.s32 %v226, %v228
    %v230 = vrot.slane %v216, %v229
    %v231 = vlaneseq
    %v232 = vshrl.u32 %v231, 7
    %v233 = vsub.s32 0, %v232
    %v234 = vrot.slane %v223, %v233
    %v235 = vlaneseq
    %v236 = vshrl.u32 %v235, 7
    %v237 = vsub.s32 0, %v236
    %v238 = vrot.slane %v230, %v237
    %243 = vrot.lane.b32.xlu0 %v167, 96
    %v244 = vpop.permute.xlu0 %243
    %245 = vrot.lane.b32.xlu0 %v172, 96
    %v246 = vpop.permute.xlu0 %245
    %vm247 = vcmask 64512
    %v249 = vsel %vm247, %v205, 0
    %v251 = vsel %vm247, %v244, 0
    %v253 = vsel %vm247, %v246, 0
    %255 = vmatprep.subr.mxu0 0.0
    %256 = vmatpush1.xpose.msra.mxu0 0.0
    %257 = vmatprep.subr.mxu0 0.0
    %258 = vmatpush1.xpose.msra.mxu0 0.0
    %259 = vmatprep.subr.mxu0 0.0
    %260 = vmatpush1.xpose.msra.mxu0 0.0
    %261 = vmatprep.subr.mxu0 0.0
    %262 = vmatpush1.xpose.msra.mxu0 0.0
    %263 = vmatprep.subr.mxu0 0.0
    %264 = vmatpush1.xpose.msra.mxu0 0.0
    %265 = vmatprep.subr.mxu0 0.0
    %266 = vmatpush1.xpose.msra.mxu0 0.0
    %267 = vmatprep.subr.mxu0 0.0
    %268 = vmatpush1.xpose.msra.mxu0 0.0
    %269 = vmatprep.subr.mxu0 0.0
    %270 = vmatpush1.xpose.msra.mxu0 0.0
    %271 = vmatprep.subr.mxu0 0.0
    %272 = vmatpush1.xpose.msra.mxu0 0.0
    %273 = vmatprep.subr.mxu0 0.0
    %274 = vmatpush1.xpose.msra.mxu0 0.0
    %275 = vmatprep.subr.mxu0 0.0
    %276 = vmatpush1.xpose.msra.mxu0 0.0
    %277 = vmatprep.subr.mxu0 0.0
    %278 = vmatpush1.xpose.msra.mxu0 0.0
    %279 = vmatprep.subr.mxu0 0.0
    %280 = vmatpush1.xpose.msra.mxu0 0.0
    %281 = vmatprep.subr.mxu0 0.0
    %282 = vmatpush1.xpose.msra.mxu0 0.0
    %283 = vmatprep.subr.mxu0 0.0
    %284 = vmatpush1.xpose.msra.mxu0 %v253
    %285 = vmatprep.subr.mxu0 0.0
    %286 = vmatpush1.xpose.msra.mxu0 %v251
    %287 = vmatprep.subr.mxu0 0.0
    %288 = vmatpush2.xpose.msra.mxu0 0.0
    %289 = vmatprep.subr.mxu0 0.0
    %290 = vmatpush2.xpose.msra.mxu0 0.0
    %291 = vmatprep.subr.mxu0 0.0
    %292 = vmatpush2.xpose.msra.mxu0 0.0
    %293 = vmatprep.subr.mxu0 0.0
    %294 = vmatpush2.xpose.msra.mxu0 0.0
    %295 = vmatprep.subr.mxu0 0.0
    %296 = vmatpush2.xpose.msra.mxu0 0.0
    %297 = vmatprep.subr.mxu0 0.0
    %298 = vmatpush2.xpose.msra.mxu0 0.0
    %299 = vmatprep.subr.mxu0 0.0
    %300 = vmatpush2.xpose.msra.mxu0 0.0
    %301 = vmatprep.subr.mxu0 0.0
    %302 = vmatpush2.xpose.msra.mxu0 0.0
    %303 = vmatprep.subr.mxu0 0.0
    %304 = vmatpush2.xpose.msra.mxu0 0.0
    %305 = vmatprep.subr.mxu0 0.0
    %306 = vmatpush2.xpose.msra.mxu0 0.0
    %307 = vmatprep.subr.mxu0 0.0
    %308 = vmatpush2.xpose.msra.mxu0 0.0
    %309 = vmatprep.subr.mxu0 0.0
    %310 = vmatpush2.xpose.msra.mxu0 0.0
    %311 = vmatprep.subr.mxu0 0.0
    %312 = vmatpush2.xpose.msra.mxu0 0.0
    %313 = vmatprep.subr.mxu0 0.0
    %314 = vmatpush2.xpose.msra.mxu0 0.0
    %315 = vmatprep.subr.mxu0 0.0
    %316 = vmatpush2.xpose.msra.mxu0 0.0
    %317 = vmatprep.subr.mxu0 0.0
    %318 = vmatpush2.xpose.msra.mxu0 0.0
    %319 = vmatprep.mubr.f32.mxu0 0.0
    %320 = vmatmul.mubr.f32.gmra.mxu0 %v249
    %v321 = vpop.f32.mrf.mxu0
    %v322 = vadd.f32 %v234, %v321
    %v323 = vpop.f32.mrf.mxu0
    %324 = vdwg.mxu0
    %327 = vrot.lane.b32.xlu0 %v177, 96
    %v328 = vpop.permute.xlu0 %327
    %329 = vrot.lane.b32.xlu0 %v182, 96
    %v330 = vpop.permute.xlu0 %329
    %v332 = vsel %vm247, %v206, 0
    %v334 = vsel %vm247, %v328, 0
    %v336 = vsel %vm247, %v330, 0
    %338 = vmatprep.subr.mxu0 0.0
    %339 = vmatpush1.xpose.msra.mxu0 0.0
    %340 = vmatprep.subr.mxu0 0.0
    %341 = vmatpush1.xpose.msra.mxu0 0.0
    %342 = vmatprep.subr.mxu0 0.0
    %343 = vmatpush1.xpose.msra.mxu0 0.0
    %344 = vmatprep.subr.mxu0 0.0
    %345 = vmatpush1.xpose.msra.mxu0 0.0
    %346 = vmatprep.subr.mxu0 0.0
    %347 = vmatpush1.xpose.msra.mxu0 0.0
    %348 = vmatprep.subr.mxu0 0.0
    %349 = vmatpush1.xpose.msra.mxu0 0.0
    %350 = vmatprep.subr.mxu0 0.0
    %351 = vmatpush1.xpose.msra.mxu0 0.0
    %352 = vmatprep.subr.mxu0 0.0
    %353 = vmatpush1.xpose.msra.mxu0 0.0
    %354 = vmatprep.subr.mxu0 0.0
    %355 = vmatpush1.xpose.msra.mxu0 0.0
    %356 = vmatprep.subr.mxu0 0.0
    %357 = vmatpush1.xpose.msra.mxu0 0.0
    %358 = vmatprep.subr.mxu0 0.0
    %359 = vmatpush1.xpose.msra.mxu0 0.0
    %360 = vmatprep.subr.mxu0 0.0
    %361 = vmatpush1.xpose.msra.mxu0 0.0
    %362 = vmatprep.subr.mxu0 0.0
    %363 = vmatpush1.xpose.msra.mxu0 0.0
    %364 = vmatprep.subr.mxu0 0.0
    %365 = vmatpush1.xpose.msra.mxu0 0.0
    %366 = vmatprep.subr.mxu0 0.0
    %367 = vmatpush1.xpose.msra.mxu0 %v336
    %368 = vmatprep.subr.mxu0 0.0
    %369 = vmatpush1.xpose.msra.mxu0 %v334
    %370 = vmatprep.subr.mxu0 0.0
    %371 = vmatpush2.xpose.msra.mxu0 0.0
    %372 = vmatprep.subr.mxu0 0.0
    %373 = vmatpush2.xpose.msra.mxu0 0.0
    %374 = vmatprep.subr.mxu0 0.0
    %375 = vmatpush2.xpose.msra.mxu0 0.0
    %376 = vmatprep.subr.mxu0 0.0
    %377 = vmatpush2.xpose.msra.mxu0 0.0
    %378 = vmatprep.subr.mxu0 0.0
    %379 = vmatpush2.xpose.msra.mxu0 0.0
    %380 = vmatprep.subr.mxu0 0.0
    %381 = vmatpush2.xpose.msra.mxu0 0.0
    %382 = vmatprep.subr.mxu0 0.0
    %383 = vmatpush2.xpose.msra.mxu0 0.0
    %384 = vmatprep.subr.mxu0 0.0
    %385 = vmatpush2.xpose.msra.mxu0 0.0
    %386 = vmatprep.subr.mxu0 0.0
    %387 = vmatpush2.xpose.msra.mxu0 0.0
    %388 = vmatprep.subr.mxu0 0.0
    %389 = vmatpush2.xpose.msra.mxu0 0.0
    %390 = vmatprep.subr.mxu0 0.0
    %391 = vmatpush2.xpose.msra.mxu0 0.0
    %392 = vmatprep.subr.mxu0 0.0
    %393 = vmatpush2.xpose.msra.mxu0 0.0
    %394 = vmatprep.subr.mxu0 0.0
    %395 = vmatpush2.xpose.msra.mxu0 0.0
    %396 = vmatprep.subr.mxu0 0.0
    %397 = vmatpush2.xpose.msra.mxu0 0.0
    %398 = vmatprep.subr.mxu0 0.0
    %399 = vmatpush2.xpose.msra.mxu0 0.0
    %400 = vmatprep.subr.mxu0 0.0
    %401 = vmatpush2.xpose.msra.mxu0 0.0
    %402 = vmatprep.mubr.f32.mxu0 0.0
    %403 = vmatmul.mubr.f32.gmra.mxu0 %v332
    %v404 = vpop.f32.mrf.mxu0
    %v405 = vadd.f32 %v238, %v404
    %v406 = vpop.f32.mrf.mxu0
    %407 = vdwg.mxu0
    %vm408 = vcmask 130048
    %v409 = vsel %vm408, %v322, -inf
    %410 = vmax.xlane.f32.xlu0 %v409
    %v411 = vpop.xlane.xlu0 %410
    %v412 = vsel %vm408, %v405, -inf
    %413 = vmax.xlane.f32.xlu0 %v412
    %v414 = vpop.xlane.xlu0 %413
    %v415 = vsub.f32 %v322, %v411
    %v416 = vsub.f32 %v405, %v414
    %v417 = vmul.f32 %v415, 1.442695
    %v418 = vpow.pop %v417
    %v419 = vmul.f32 %v416, 1.442695
    %v420 = vpow.pop %v419
    %v421 = vsel %vm408, %v418, 0.0
    %422 = vadd.xlane.f32.xlu0 %v421
    %v423 = vpop.xlane.xlu0 %422
    %v424 = vsel %vm408, %v420, 0.0
    %425 = vadd.xlane.f32.xlu0 %v424
    %v426 = vpop.xlane.xlu0 %425
    %v427 = vrcp.pop %v423
    %v428 = vrcp.pop %v426
    %v429 = vmul.f32 %v418, %v427
    %v430 = vmul.f32 %v420, %v428
    %433 = vrot.lane.b32.xlu0 %v187, 64
    %v434 = vpop.permute.xlu0 %433
    %435 = vrot.lane.b32.xlu0 %v192, 64
    %v436 = vpop.permute.xlu0 %435
    %v440 = vsel %vm408, %v429, 0
    %442 = vmatprep.subr.mxu0 0.0
    %443 = vmatpush1.msra.mxu0 0.0
    %444 = vmatprep.subr.mxu0 0.0
    %445 = vmatpush1.msra.mxu0 0.0
    %446 = vmatprep.subr.mxu0 0.0
    %447 = vmatpush1.msra.mxu0 0.0
    %448 = vmatprep.subr.mxu0 0.0
    %449 = vmatpush1.msra.mxu0 0.0
    %450 = vmatprep.subr.mxu0 0.0
    %451 = vmatpush1.msra.mxu0 0.0
    %452 = vmatprep.subr.mxu0 0.0
    %453 = vmatpush1.msra.mxu0 0.0
    %454 = vmatprep.subr.mxu0 0.0
    %455 = vmatpush1.msra.mxu0 0.0
    %456 = vmatprep.subr.mxu0 0.0
    %457 = vmatpush1.msra.mxu0 0.0
    %458 = vmatprep.subr.mxu0 0.0
    %459 = vmatpush1.msra.mxu0 0.0
    %460 = vmatprep.subr.mxu0 0.0
    %461 = vmatpush1.msra.mxu0 0.0
    %462 = vmatprep.subr.mxu0 0.0
    %463 = vmatpush1.msra.mxu0 0.0
    %464 = vmatprep.subr.mxu0 0.0
    %465 = vmatpush1.msra.mxu0 0.0
    %466 = vmatprep.subr.mxu0 0.0
    %467 = vmatpush1.msra.mxu0 0.0
    %468 = vmatprep.subr.mxu0 0.0
    %469 = vmatpush1.msra.mxu0 0.0
    %470 = vmatprep.subr.mxu0 0.0
    %471 = vmatpush1.msra.mxu0 %v436
    %472 = vmatprep.subr.mxu0 0.0
    %473 = vmatpush1.msra.mxu0 %v434
    %474 = vmatprep.subr.mxu0 0.0
    %475 = vmatpush2.msra.mxu0 0.0
    %476 = vmatprep.subr.mxu0 0.0
    %477 = vmatpush2.msra.mxu0 0.0
    %478 = vmatprep.subr.mxu0 0.0
    %479 = vmatpush2.msra.mxu0 0.0
    %480 = vmatprep.subr.mxu0 0.0
    %481 = vmatpush2.msra.mxu0 0.0
    %482 = vmatprep.subr.mxu0 0.0
    %483 = vmatpush2.msra.mxu0 0.0
    %484 = vmatprep.subr.mxu0 0.0
    %485 = vmatpush2.msra.mxu0 0.0
    %486 = vmatprep.subr.mxu0 0.0
    %487 = vmatpush2.msra.mxu0 0.0
    %488 = vmatprep.subr.mxu0 0.0
    %489 = vmatpush2.msra.mxu0 0.0
    %490 = vmatprep.subr.mxu0 0.0
    %491 = vmatpush2.msra.mxu0 0.0
    %492 = vmatprep.subr.mxu0 0.0
    %493 = vmatpush2.msra.mxu0 0.0
    %494 = vmatprep.subr.mxu0 0.0
    %495 = vmatpush2.msra.mxu0 0.0
    %496 = vmatprep.subr.mxu0 0.0
    %497 = vmatpush2.msra.mxu0 0.0
    %498 = vmatprep.subr.mxu0 0.0
    %499 = vmatpush2.msra.mxu0 0.0
    %500 = vmatprep.subr.mxu0 0.0
    %501 = vmatpush2.msra.mxu0 0.0
    %502 = vmatprep.subr.mxu0 0.0
    %503 = vmatpush2.msra.mxu0 0.0
    %504 = vmatprep.subr.mxu0 0.0
    %505 = vmatpush2.msra.mxu0 0.0
    %506 = vmatprep.mubr.f32.mxu0 0.0
    %507 = vmatmul.mubr.f32.gmra.mxu0 %v440
    %v508 = vpop.f32.mrf.mxu0
    %v509 = vadd.f32 0.0, %v508
    %v510 = vpop.f32.mrf.mxu0
    %511 = vdwg.mxu0
    %514 = vrot.lane.b32.xlu0 %v197, 64
    %v515 = vpop.permute.xlu0 %514
    %516 = vrot.lane.b32.xlu0 %v202, 64
    %v517 = vpop.permute.xlu0 %516
    %v521 = vsel %vm408, %v430, 0
    %523 = vmatprep.subr.mxu0 0.0
    %524 = vmatpush1.msra.mxu0 0.0
    %525 = vmatprep.subr.mxu0 0.0
    %526 = vmatpush1.msra.mxu0 0.0
    %527 = vmatprep.subr.mxu0 0.0
    %528 = vmatpush1.msra.mxu0 0.0
    %529 = vmatprep.subr.mxu0 0.0
    %530 = vmatpush1.msra.mxu0 0.0
    %531 = vmatprep.subr.mxu0 0.0
    %532 = vmatpush1.msra.mxu0 0.0
    %533 = vmatprep.subr.mxu0 0.0
    %534 = vmatpush1.msra.mxu0 0.0
    %535 = vmatprep.subr.mxu0 0.0
    %536 = vmatpush1.msra.mxu0 0.0
    %537 = vmatprep.subr.mxu0 0.0
    %538 = vmatpush1.msra.mxu0 0.0
    %539 = vmatprep.subr.mxu0 0.0
    %540 = vmatpush1.msra.mxu0 0.0
    %541 = vmatprep.subr.mxu0 0.0
    %542 = vmatpush1.msra.mxu0 0.0
    %543 = vmatprep.subr.mxu0 0.0
    %544 = vmatpush1.msra.mxu0 0.0
    %545 = vmatprep.subr.mxu0 0.0
    %546 = vmatpush1.msra.mxu0 0.0
    %547 = vmatprep.subr.mxu0 0.0
    %548 = vmatpush1.msra.mxu0 0.0
    %549 = vmatprep.subr.mxu0 0.0
    %550 = vmatpush1.msra.mxu0 0.0
    %551 = vmatprep.subr.mxu0 0.0
    %552 = vmatpush1.msra.mxu0 %v517
    %553 = vmatprep.subr.mxu0 0.0
    %554 = vmatpush1.msra.mxu0 %v515
    %555 = vmatprep.subr.mxu0 0.0
    %556 = vmatpush2.msra.mxu0 0.0
    %557 = vmatprep.subr.mxu0 0.0
    %558 = vmatpush2.msra.mxu0 0.0
    %559 = vmatprep.subr.mxu0 0.0
    %560 = vmatpush2.msra.mxu0 0.0
    %561 = vmatprep.subr.mxu0 0.0
    %562 = vmatpush2.msra.mxu0 0.0
    %563 = vmatprep.subr.mxu0 0.0
    %564 = vmatpush2.msra.mxu0 0.0
    %565 = vmatprep.subr.mxu0 0.0
    %566 = vmatpush2.msra.mxu0 0.0
    %567 = vmatprep.subr.mxu0 0.0
    %568 = vmatpush2.msra.mxu0 0.0
    %569 = vmatprep.subr.mxu0 0.0
    %570 = vmatpush2.msra.mxu0 0.0
    %571 = vmatprep.subr.mxu0 0.0
    %572 = vmatpush2.msra.mxu0 0.0
    %573 = vmatprep.subr.mxu0 0.0
    %574 = vmatpush2.msra.mxu0 0.0
    %575 = vmatprep.subr.mxu0 0.0
    %576 = vmatpush2.msra.mxu0 0.0
    %577 = vmatprep.subr.mxu0 0.0
    %578 = vmatpush2.msra.mxu0 0.0
    %579 = vmatprep.subr.mxu0 0.0
    %580 = vmatpush2.msra.mxu0 0.0
    %581 = vmatprep.subr.mxu0 0.0
    %582 = vmatpush2.msra.mxu0 0.0
    %583 = vmatprep.subr.mxu0 0.0
    %584 = vmatpush2.msra.mxu0 0.0
    %585 = vmatprep.subr.mxu0 0.0
    %586 = vmatpush2.msra.mxu0 0.0
    %587 = vmatprep.mubr.f32.mxu0 0.0
    %588 = vmatmul.mubr.f32.gmra.mxu0 %v521
    %v589 = vpop.f32.mrf.mxu0
    %v590 = vadd.f32 0.0, %v589
    %v591 = vpop.f32.mrf.mxu0
    %592 = vdwg.mxu0
    %593 = vrot.lane.b32.xlu0 %v205, 120
    %v594 = vpop.permute.xlu0 %593
    %595 = vrot.lane.b32.xlu0 %v167, 88
    %v596 = vpop.permute.xlu0 %595
    %597 = vrot.lane.b32.xlu0 %v172, 88
    %v598 = vpop.permute.xlu0 %597
    %v599 = vsel %vm247, %v594, 0
    %v601 = vsel %vm247, %v596, 0
    %v603 = vsel %vm247, %v598, 0
    %605 = vmatprep.subr.mxu0 0.0
    %606 = vmatpush1.xpose.msra.mxu0 0.0
    %607 = vmatprep.subr.mxu0 0.0
    %608 = vmatpush1.xpose.msra.mxu0 0.0
    %609 = vmatprep.subr.mxu0 0.0
    %610 = vmatpush1.xpose.msra.mxu0 0.0
    %611 = vmatprep.subr.mxu0 0.0
    %612 = vmatpush1.xpose.msra.mxu0 0.0
    %613 = vmatprep.subr.mxu0 0.0
    %614 = vmatpush1.xpose.msra.mxu0 0.0
    %615 = vmatprep.subr.mxu0 0.0
    %616 = vmatpush1.xpose.msra.mxu0 0.0
    %617 = vmatprep.subr.mxu0 0.0
    %618 = vmatpush1.xpose.msra.mxu0 0.0
    %619 = vmatprep.subr.mxu0 0.0
    %620 = vmatpush1.xpose.msra.mxu0 0.0
    %621 = vmatprep.subr.mxu0 0.0
    %622 = vmatpush1.xpose.msra.mxu0 0.0
    %623 = vmatprep.subr.mxu0 0.0
    %624 = vmatpush1.xpose.msra.mxu0 0.0
    %625 = vmatprep.subr.mxu0 0.0
    %626 = vmatpush1.xpose.msra.mxu0 0.0
    %627 = vmatprep.subr.mxu0 0.0
    %628 = vmatpush1.xpose.msra.mxu0 0.0
    %629 = vmatprep.subr.mxu0 0.0
    %630 = vmatpush1.xpose.msra.mxu0 0.0
    %631 = vmatprep.subr.mxu0 0.0
    %632 = vmatpush1.xpose.msra.mxu0 0.0
    %633 = vmatprep.subr.mxu0 0.0
    %634 = vmatpush1.xpose.msra.mxu0 %v603
    %635 = vmatprep.subr.mxu0 0.0
    %636 = vmatpush1.xpose.msra.mxu0 %v601
    %637 = vmatprep.subr.mxu0 0.0
    %638 = vmatpush2.xpose.msra.mxu0 0.0
    %639 = vmatprep.subr.mxu0 0.0
    %640 = vmatpush2.xpose.msra.mxu0 0.0
    %641 = vmatprep.subr.mxu0 0.0
    %642 = vmatpush2.xpose.msra.mxu0 0.0
    %643 = vmatprep.subr.mxu0 0.0
    %644 = vmatpush2.xpose.msra.mxu0 0.0
    %645 = vmatprep.subr.mxu0 0.0
    %646 = vmatpush2.xpose.msra.mxu0 0.0
    %647 = vmatprep.subr.mxu0 0.0
    %648 = vmatpush2.xpose.msra.mxu0 0.0
    %649 = vmatprep.subr.mxu0 0.0
    %650 = vmatpush2.xpose.msra.mxu0 0.0
    %651 = vmatprep.subr.mxu0 0.0
    %652 = vmatpush2.xpose.msra.mxu0 0.0
    %653 = vmatprep.subr.mxu0 0.0
    %654 = vmatpush2.xpose.msra.mxu0 0.0
    %655 = vmatprep.subr.mxu0 0.0
    %656 = vmatpush2.xpose.msra.mxu0 0.0
    %657 = vmatprep.subr.mxu0 0.0
    %658 = vmatpush2.xpose.msra.mxu0 0.0
    %659 = vmatprep.subr.mxu0 0.0
    %660 = vmatpush2.xpose.msra.mxu0 0.0
    %661 = vmatprep.subr.mxu0 0.0
    %662 = vmatpush2.xpose.msra.mxu0 0.0
    %663 = vmatprep.subr.mxu0 0.0
    %664 = vmatpush2.xpose.msra.mxu0 0.0
    %665 = vmatprep.subr.mxu0 0.0
    %666 = vmatpush2.xpose.msra.mxu0 0.0
    %667 = vmatprep.subr.mxu0 0.0
    %668 = vmatpush2.xpose.msra.mxu0 0.0
    %669 = vmatprep.mubr.f32.mxu0 0.0
    %670 = vmatmul.mubr.f32.gmra.mxu0 %v599
    %v671 = vpop.f32.mrf.mxu0
    %v672 = vadd.f32 %v234, %v671
    %v673 = vpop.f32.mrf.mxu0
    %674 = vdwg.mxu0
    %675 = vrot.lane.b32.xlu0 %v206, 120
    %v676 = vpop.permute.xlu0 %675
    %677 = vrot.lane.b32.xlu0 %v177, 88
    %v678 = vpop.permute.xlu0 %677
    %679 = vrot.lane.b32.xlu0 %v182, 88
    %v680 = vpop.permute.xlu0 %679
    %v681 = vsel %vm247, %v676, 0
    %v683 = vsel %vm247, %v678, 0
    %v685 = vsel %vm247, %v680, 0
    %687 = vmatprep.subr.mxu0 0.0
    %688 = vmatpush1.xpose.msra.mxu0 0.0
    %689 = vmatprep.subr.mxu0 0.0
    %690 = vmatpush1.xpose.msra.mxu0 0.0
    %691 = vmatprep.subr.mxu0 0.0
    %692 = vmatpush1.xpose.msra.mxu0 0.0
    %693 = vmatprep.subr.mxu0 0.0
    %694 = vmatpush1.xpose.msra.mxu0 0.0
    %695 = vmatprep.subr.mxu0 0.0
    %696 = vmatpush1.xpose.msra.mxu0 0.0
    %697 = vmatprep.subr.mxu0 0.0
    %698 = vmatpush1.xpose.msra.mxu0 0.0
    %699 = vmatprep.subr.mxu0 0.0
    %700 = vmatpush1.xpose.msra.mxu0 0.0
    %701 = vmatprep.subr.mxu0 0.0
    %702 = vmatpush1.xpose.msra.mxu0 0.0
    %703 = vmatprep.subr.mxu0 0.0
    %704 = vmatpush1.xpose.msra.mxu0 0.0
    %705 = vmatprep.subr.mxu0 0.0
    %706 = vmatpush1.xpose.msra.mxu0 0.0
    %707 = vmatprep.subr.mxu0 0.0
    %708 = vmatpush1.xpose.msra.mxu0 0.0
    %709 = vmatprep.subr.mxu0 0.0
    %710 = vmatpush1.xpose.msra.mxu0 0.0
    %711 = vmatprep.subr.mxu0 0.0
    %712 = vmatpush1.xpose.msra.mxu0 0.0
    %713 = vmatprep.subr.mxu0 0.0
    %714 = vmatpush1.xpose.msra.mxu0 0.0
    %715 = vmatprep.subr.mxu0 0.0
    %716 = vmatpush1.xpose.msra.mxu0 %v685
    %717 = vmatprep.subr.mxu0 0.0
    %718 = vmatpush1.xpose.msra.mxu0 %v683
    %719 = vmatprep.subr.mxu0 0.0
    %720 = vmatpush2.xpose.msra.mxu0 0.0
    %721 = vmatprep.subr.mxu0 0.0
    %722 = vmatpush2.xpose.msra.mxu0 0.0
    %723 = vmatprep.subr.mxu0 0.0
    %724 = vmatpush2.xpose.msra.mxu0 0.0
    %725 = vmatprep.subr.mxu0 0.0
    %726 = vmatpush2.xpose.msra.mxu0 0.0
    %727 = vmatprep.subr.mxu0 0.0
    %728 = vmatpush2.xpose.msra.mxu0 0.0
    %729 = vmatprep.subr.mxu0 0.0
    %730 = vmatpush2.xpose.msra.mxu0 0.0
    %731 = vmatprep.subr.mxu0 0.0
    %732 = vmatpush2.xpose.msra.mxu0 0.0
    %733 = vmatprep.subr.mxu0 0.0
    %734 = vmatpush2.xpose.msra.mxu0 0.0
    %735 = vmatprep.subr.mxu0 0.0
    %736 = vmatpush2.xpose.msra.mxu0 0.0
    %737 = vmatprep.subr.mxu0 0.0
    %738 = vmatpush2.xpose.msra.mxu0 0.0
    %739 = vmatprep.subr.mxu0 0.0
    %740 = vmatpush2.xpose.msra.mxu0 0.0
    %741 = vmatprep.subr.mxu0 0.0
    %742 = vmatpush2.xpose.msra.mxu0 0.0
    %743 = vmatprep.subr.mxu0 0.0
    %744 = vmatpush2.xpose.msra.mxu0 0.0
    %745 = vmatprep.subr.mxu0 0.0
    %746 = vmatpush2.xpose.msra.mxu0 0.0
    %747 = vmatprep.subr.mxu0 0.0
    %748 = vmatpush2.xpose.msra.mxu0 0.0
    %749 = vmatprep.subr.mxu0 0.0
    %750 = vmatpush2.xpose.msra.mxu0 0.0
    %751 = vmatprep.mubr.f32.mxu0 0.0
    %752 = vmatmul.mubr.f32.gmra.mxu0 %v681
    %v753 = vpop.f32.mrf.mxu0
    %v754 = vadd.f32 %v238, %v753
    %v755 = vpop.f32.mrf.mxu0
    %756 = vdwg.mxu0
    %v757 = vsel %vm408, %v672, -inf
    %758 = vmax.xlane.f32.xlu0 %v757
    %v759 = vpop.xlane.xlu0 %758
    %v760 = vsel %vm408, %v754, -inf
    %761 = vmax.xlane.f32.xlu0 %v760
    %v762 = vpop.xlane.xlu0 %761
    %v763 = vsub.f32 %v672, %v759
    %v764 = vsub.f32 %v754, %v762
    %v765 = vmul.f32 %v763, 1.442695
    %v766 = vpow.pop %v765
    %v767 = vmul.f32 %v764, 1.442695
    %v768 = vpow.pop %v767
    %v769 = vsel %vm408, %v766, 0.0
    %770 = vadd.xlane.f32.xlu0 %v769
    %v771 = vpop.xlane.xlu0 %770
    %v772 = vsel %vm408, %v768, 0.0
    %773 = vadd.xlane.f32.xlu0 %v772
    %v774 = vpop.xlane.xlu0 %773
    %v775 = vrcp.pop %v771
    %v776 = vrcp.pop %v774
    %v777 = vmul.f32 %v766, %v775
    %v778 = vmul.f32 %v768, %v776
    %779 = vrot.lane.b32.xlu0 %v187, 56
    %v780 = vpop.permute.xlu0 %779
    %781 = vrot.lane.b32.xlu0 %v192, 56
    %v782 = vpop.permute.xlu0 %781
    %v786 = vsel %vm408, %v777, 0
    %788 = vmatprep.subr.mxu0 0.0
    %789 = vmatpush1.msra.mxu0 0.0
    %790 = vmatprep.subr.mxu0 0.0
    %791 = vmatpush1.msra.mxu0 0.0
    %792 = vmatprep.subr.mxu0 0.0
    %793 = vmatpush1.msra.mxu0 0.0
    %794 = vmatprep.subr.mxu0 0.0
    %795 = vmatpush1.msra.mxu0 0.0
    %796 = vmatprep.subr.mxu0 0.0
    %797 = vmatpush1.msra.mxu0 0.0
    %798 = vmatprep.subr.mxu0 0.0
    %799 = vmatpush1.msra.mxu0 0.0
    %800 = vmatprep.subr.mxu0 0.0
    %801 = vmatpush1.msra.mxu0 0.0
    %802 = vmatprep.subr.mxu0 0.0
    %803 = vmatpush1.msra.mxu0 0.0
    %804 = vmatprep.subr.mxu0 0.0
    %805 = vmatpush1.msra.mxu0 0.0
    %806 = vmatprep.subr.mxu0 0.0
    %807 = vmatpush1.msra.mxu0 0.0
    %808 = vmatprep.subr.mxu0 0.0
    %809 = vmatpush1.msra.mxu0 0.0
    %810 = vmatprep.subr.mxu0 0.0
    %811 = vmatpush1.msra.mxu0 0.0
    %812 = vmatprep.subr.mxu0 0.0
    %813 = vmatpush1.msra.mxu0 0.0
    %814 = vmatprep.subr.mxu0 0.0
    %815 = vmatpush1.msra.mxu0 0.0
    %816 = vmatprep.subr.mxu0 0.0
    %817 = vmatpush1.msra.mxu0 %v782
    %818 = vmatprep.subr.mxu0 0.0
    %819 = vmatpush1.msra.mxu0 %v780
    %820 = vmatprep.subr.mxu0 0.0
    %821 = vmatpush2.msra.mxu0 0.0
    %822 = vmatprep.subr.mxu0 0.0
    %823 = vmatpush2.msra.mxu0 0.0
    %824 = vmatprep.subr.mxu0 0.0
    %825 = vmatpush2.msra.mxu0 0.0
    %826 = vmatprep.subr.mxu0 0.0
    %827 = vmatpush2.msra.mxu0 0.0
    %828 = vmatprep.subr.mxu0 0.0
    %829 = vmatpush2.msra.mxu0 0.0
    %830 = vmatprep.subr.mxu0 0.0
    %831 = vmatpush2.msra.mxu0 0.0
    %832 = vmatprep.subr.mxu0 0.0
    %833 = vmatpush2.msra.mxu0 0.0
    %834 = vmatprep.subr.mxu0 0.0
    %835 = vmatpush2.msra.mxu0 0.0
    %836 = vmatprep.subr.mxu0 0.0
    %837 = vmatpush2.msra.mxu0 0.0
    %838 = vmatprep.subr.mxu0 0.0
    %839 = vmatpush2.msra.mxu0 0.0
    %840 = vmatprep.subr.mxu0 0.0
    %841 = vmatpush2.msra.mxu0 0.0
    %842 = vmatprep.subr.mxu0 0.0
    %843 = vmatpush2.msra.mxu0 0.0
    %844 = vmatprep.subr.mxu0 0.0
    %845 = vmatpush2.msra.mxu0 0.0
    %846 = vmatprep.subr.mxu0 0.0
    %847 = vmatpush2.msra.mxu0 0.0
    %848 = vmatprep.subr.mxu0 0.0
    %849 = vmatpush2.msra.mxu0 0.0
    %850 = vmatprep.subr.mxu0 0.0
    %851 = vmatpush2.msra.mxu0 0.0
    %852 = vmatprep.mubr.f32.mxu0 0.0
    %853 = vmatmul.mubr.f32.gmra.mxu0 %v786
    %v854 = vpop.f32.mrf.mxu0
    %v855 = vadd.f32 0.0, %v854
    %v856 = vpop.f32.mrf.mxu0
    %857 = vdwg.mxu0
    %858 = vrot.lane.b32.xlu0 %v197, 56
    %v859 = vpop.permute.xlu0 %858
    %860 = vrot.lane.b32.xlu0 %v202, 56
    %v861 = vpop.permute.xlu0 %860
    %v865 = vsel %vm408, %v778, 0
    %867 = vmatprep.subr.mxu0 0.0
    %868 = vmatpush1.msra.mxu0 0.0
    %869 = vmatprep.subr.mxu0 0.0
    %870 = vmatpush1.msra.mxu0 0.0
    %871 = vmatprep.subr.mxu0 0.0
    %872 = vmatpush1.msra.mxu0 0.0
    %873 = vmatprep.subr.mxu0 0.0
    %874 = vmatpush1.msra.mxu0 0.0
    %875 = vmatprep.subr.mxu0 0.0
    %876 = vmatpush1.msra.mxu0 0.0
    %877 = vmatprep.subr.mxu0 0.0
    %878 = vmatpush1.msra.mxu0 0.0
    %879 = vmatprep.subr.mxu0 0.0
    %880 = vmatpush1.msra.mxu0 0.0
    %881 = vmatprep.subr.mxu0 0.0
    %882 = vmatpush1.msra.mxu0 0.0
    %883 = vmatprep.subr.mxu0 0.0
    %884 = vmatpush1.msra.mxu0 0.0
    %885 = vmatprep.subr.mxu0 0.0
    %886 = vmatpush1.msra.mxu0 0.0
    %887 = vmatprep.subr.mxu0 0.0
    %888 = vmatpush1.msra.mxu0 0.0
    %889 = vmatprep.subr.mxu0 0.0
    %890 = vmatpush1.msra.mxu0 0.0
    %891 = vmatprep.subr.mxu0 0.0
    %892 = vmatpush1.msra.mxu0 0.0
    %893 = vmatprep.subr.mxu0 0.0
    %894 = vmatpush1.msra.mxu0 0.0
    %895 = vmatprep.subr.mxu0 0.0
    %896 = vmatpush1.msra.mxu0 %v861
    %897 = vmatprep.subr.mxu0 0.0
    %898 = vmatpush1.msra.mxu0 %v859
    %899 = vmatprep.subr.mxu0 0.0
    %900 = vmatpush2.msra.mxu0 0.0
    %901 = vmatprep.subr.mxu0 0.0
    %902 = vmatpush2.msra.mxu0 0.0
    %903 = vmatprep.subr.mxu0 0.0
    %904 = vmatpush2.msra.mxu0 0.0
    %905 = vmatprep.subr.mxu0 0.0
    %906 = vmatpush2.msra.mxu0 0.0
    %907 = vmatprep.subr.mxu0 0.0
    %908 = vmatpush2.msra.mxu0 0.0
    %909 = vmatprep.subr.mxu0 0.0
    %910 = vmatpush2.msra.mxu0 0.0
    %911 = vmatprep.subr.mxu0 0.0
    %912 = vmatpush2.msra.mxu0 0.0
    %913 = vmatprep.subr.mxu0 0.0
    %914 = vmatpush2.msra.mxu0 0.0
    %915 = vmatprep.subr.mxu0 0.0
    %916 = vmatpush2.msra.mxu0 0.0
    %917 = vmatprep.subr.mxu0 0.0
    %918 = vmatpush2.msra.mxu0 0.0
    %919 = vmatprep.subr.mxu0 0.0
    %920 = vmatpush2.msra.mxu0 0.0
    %921 = vmatprep.subr.mxu0 0.0
    %922 = vmatpush2.msra.mxu0 0.0
    %923 = vmatprep.subr.mxu0 0.0
    %924 = vmatpush2.msra.mxu0 0.0
    %925 = vmatprep.subr.mxu0 0.0
    %926 = vmatpush2.msra.mxu0 0.0
    %927 = vmatprep.subr.mxu0 0.0
    %928 = vmatpush2.msra.mxu0 0.0
    %929 = vmatprep.subr.mxu0 0.0
    %930 = vmatpush2.msra.mxu0 0.0
    %931 = vmatprep.mubr.f32.mxu0 0.0
    %932 = vmatmul.mubr.f32.gmra.mxu0 %v865
    %v933 = vpop.f32.mrf.mxu0
    %v934 = vadd.f32 0.0, %v933
    %v935 = vpop.f32.mrf.mxu0
    %936 = vdwg.mxu0
    %v938 = vsel %vm247, %v855, 0
    %v941 = vsel %vm247, %v934, 0
    %943 = vmatprep.subr.mxu0 0.0
    %944 = vmatpush1.msra.mxu0 0.0
    %945 = vmatprep.subr.mxu0 0.0
    %946 = vmatpush1.msra.mxu0 0.0
    %947 = vmatprep.subr.mxu0 0.0
    %948 = vmatpush1.msra.mxu0 0.0
    %949 = vmatprep.subr.mxu0 0.0
    %950 = vmatpush1.msra.mxu0 0.0
    %951 = vmatprep.subr.mxu0 0.0
    %952 = vmatpush1.msra.mxu0 0.0
    %953 = vmatprep.subr.mxu0 0.0
    %954 = vmatpush1.msra.mxu0 0.0
    %955 = vmatprep.subr.mxu0 0.0
    %956 = vmatpush1.msra.mxu0 0.0
    %957 = vmatprep.subr.mxu0 0.0
    %958 = vmatpush1.msra.mxu0 0.0
    %959 = vmatprep.subr.mxu0 0.0
    %960 = vmatpush1.msra.mxu0 0.0
    %961 = vmatprep.subr.mxu0 0.0
    %962 = vmatpush1.msra.mxu0 0.0
    %963 = vmatprep.subr.mxu0 0.0
    %964 = vmatpush1.msra.mxu0 0.0
    %965 = vmatprep.subr.mxu0 0.0
    %966 = vmatpush1.msra.mxu0 0.0
    %967 = vmatprep.subr.mxu0 0.0
    %968 = vmatpush1.msra.mxu0 0.0
    %969 = vmatprep.subr.mxu0 0.0
    %970 = vmatpush1.msra.mxu0 0.0
    %971 = vmatprep.subr.mxu0 0.0
    %972 = vmatpush1.msra.mxu0 0.0
    %973 = vmatprep.subr.mxu0 0.0
    %974 = vmatpush1.msra.mxu0 %v30
    %975 = vmatprep.subr.mxu0 0.0
    %976 = vmatpush2.msra.mxu0 0.0
    %977 = vmatprep.subr.mxu0 0.0
    %978 = vmatpush2.msra.mxu0 0.0
    %979 = vmatprep.subr.mxu0 0.0
    %980 = vmatpush2.msra.mxu0 0.0
    %981 = vmatprep.subr.mxu0 0.0
    %982 = vmatpush2.msra.mxu0 0.0
    %983 = vmatprep.subr.mxu0 0.0
    %984 = vmatpush2.msra.mxu0 0.0
    %985 = vmatprep.subr.mxu0 0.0
    %986 = vmatpush2.msra.mxu0 0.0
    %987 = vmatprep.subr.mxu0 0.0
    %988 = vmatpush2.msra.mxu0 0.0
    %989 = vmatprep.subr.mxu0 0.0
    %990 = vmatpush2.msra.mxu0 0.0
    %991 = vmatprep.subr.mxu0 0.0
    %992 = vmatpush2.msra.mxu0 0.0
    %993 = vmatprep.subr.mxu0 0.0
    %994 = vmatpush2.msra.mxu0 0.0
    %995 = vmatprep.subr.mxu0 0.0
    %996 = vmatpush2.msra.mxu0 0.0
    %997 = vmatprep.subr.mxu0 0.0
    %998 = vmatpush2.msra.mxu0 0.0
    %999 = vmatprep.subr.mxu0 0.0
    %1000 = vmatpush2.msra.mxu0 0.0
    %1001 = vmatprep.subr.mxu0 0.0
    %1002 = vmatpush2.msra.mxu0 0.0
    %1003 = vmatprep.subr.mxu0 0.0
    %1004 = vmatpush2.msra.mxu0 0.0
    %1005 = vmatprep.subr.mxu0 0.0
    %1006 = vmatpush2.msra.mxu0 0.0
    %1007 = vmatprep.mubr.f32.mxu0 0.0
    %1008 = vmatmul.mubr.f32.gmra.mxu0 %v938
    %v1009 = vpop.f32.mrf.mxu0
    %v1010 = vadd.f32 0.0, %v1009
    %v1011 = vpop.f32.mrf.mxu0
    %1012 = vmatprep.mubr.f32.mxu0 0.0
    %1013 = vmatmul.mubr.f32.gmra.mxu0 %v941
    %v1014 = vpop.f32.mrf.mxu0
    %v1015 = vadd.f32 0.0, %v1014
    %v1016 = vpop.f32.mrf.mxu0
    %1017 = vdwg.mxu0
    %v1019 = vsel %vm247, %v509, 0
    %v1022 = vsel %vm247, %v590, 0
    %1024 = vmatprep.subr.mxu0 0.0
    %1025 = vmatpush1.msra.mxu0 0.0
    %1026 = vmatprep.subr.mxu0 0.0
    %1027 = vmatpush1.msra.mxu0 0.0
    %1028 = vmatprep.subr.mxu0 0.0
    %1029 = vmatpush1.msra.mxu0 0.0
    %1030 = vmatprep.subr.mxu0 0.0
    %1031 = vmatpush1.msra.mxu0 0.0
    %1032 = vmatprep.subr.mxu0 0.0
    %1033 = vmatpush1.msra.mxu0 0.0
    %1034 = vmatprep.subr.mxu0 0.0
    %1035 = vmatpush1.msra.mxu0 0.0
    %1036 = vmatprep.subr.mxu0 0.0
    %1037 = vmatpush1.msra.mxu0 0.0
    %1038 = vmatprep.subr.mxu0 0.0
    %1039 = vmatpush1.msra.mxu0 0.0
    %1040 = vmatprep.subr.mxu0 0.0
    %1041 = vmatpush1.msra.mxu0 0.0
    %1042 = vmatprep.subr.mxu0 0.0
    %1043 = vmatpush1.msra.mxu0 0.0
    %1044 = vmatprep.subr.mxu0 0.0
    %1045 = vmatpush1.msra.mxu0 0.0
    %1046 = vmatprep.subr.mxu0 0.0
    %1047 = vmatpush1.msra.mxu0 0.0
    %1048 = vmatprep.subr.mxu0 0.0
    %1049 = vmatpush1.msra.mxu0 0.0
    %1050 = vmatprep.subr.mxu0 0.0
    %1051 = vmatpush1.msra.mxu0 0.0
    %1052 = vmatprep.subr.mxu0 0.0
    %1053 = vmatpush1.msra.mxu0 0.0
    %1054 = vmatprep.subr.mxu0 0.0
    %1055 = vmatpush1.msra.mxu0 %v29
    %1056 = vmatprep.subr.mxu0 0.0
    %1057 = vmatpush2.msra.mxu0 0.0
    %1058 = vmatprep.subr.mxu0 0.0
    %1059 = vmatpush2.msra.mxu0 0.0
    %1060 = vmatprep.subr.mxu0 0.0
    %1061 = vmatpush2.msra.mxu0 0.0
    %1062 = vmatprep.subr.mxu0 0.0
    %1063 = vmatpush2.msra.mxu0 0.0
    %1064 = vmatprep.subr.mxu0 0.0
    %1065 = vmatpush2.msra.mxu0 0.0
    %1066 = vmatprep.subr.mxu0 0.0
    %1067 = vmatpush2.msra.mxu0 0.0
    %1068 = vmatprep.subr.mxu0 0.0
    %1069 = vmatpush2.msra.mxu0 0.0
    %1070 = vmatprep.subr.mxu0 0.0
    %1071 = vmatpush2.msra.mxu0 0.0
    %1072 = vmatprep.subr.mxu0 0.0
    %1073 = vmatpush2.msra.mxu0 0.0
    %1074 = vmatprep.subr.mxu0 0.0
    %1075 = vmatpush2.msra.mxu0 0.0
    %1076 = vmatprep.subr.mxu0 0.0
    %1077 = vmatpush2.msra.mxu0 0.0
    %1078 = vmatprep.subr.mxu0 0.0
    %1079 = vmatpush2.msra.mxu0 0.0
    %1080 = vmatprep.subr.mxu0 0.0
    %1081 = vmatpush2.msra.mxu0 0.0
    %1082 = vmatprep.subr.mxu0 0.0
    %1083 = vmatpush2.msra.mxu0 0.0
    %1084 = vmatprep.subr.mxu0 0.0
    %1085 = vmatpush2.msra.mxu0 0.0
    %1086 = vmatprep.subr.mxu0 0.0
    %1087 = vmatpush2.msra.mxu0 0.0
    %1088 = vmatprep.mubr.f32.mxu0 0.0
    %1089 = vmatmul.mubr.f32.gmra.mxu0 %v1019
    %v1090 = vpop.f32.mrf.mxu0
    %v1091 = vadd.f32 %v1010, %v1090
    %v1092 = vpop.f32.mrf.mxu0
    %1093 = vmatprep.mubr.f32.mxu0 0.0
    %1094 = vmatmul.mubr.f32.gmra.mxu0 %v1022
    %v1095 = vpop.f32.mrf.mxu0
    %v1096 = vadd.f32 %v1015, %v1095
    %v1097 = vpop.f32.mrf.mxu0
    %1098 = vdwg.mxu0
    %v1099 = vadd.f32 %v429, %v777
    %v1100 = vadd.f32 %v430, %v778
    %1101 = vrot.lane.b32.xlu0 %v205, 112
    %v1102 = vpop.permute.xlu0 %1101
    %1103 = vrot.lane.b32.xlu0 %v167, 80
    %v1104 = vpop.permute.xlu0 %1103
    %1105 = vrot.lane.b32.xlu0 %v172, 80
    %v1106 = vpop.permute.xlu0 %1105
    %v1107 = vsel %vm247, %v1102, 0
    %v1109 = vsel %vm247, %v1104, 0
    %v1111 = vsel %vm247, %v1106, 0
    %1113 = vmatprep.subr.mxu0 0.0
    %1114 = vmatpush1.xpose.msra.mxu0 0.0
    %1115 = vmatprep.subr.mxu0 0.0
    %1116 = vmatpush1.xpose.msra.mxu0 0.0
    %1117 = vmatprep.subr.mxu0 0.0
    %1118 = vmatpush1.xpose.msra.mxu0 0.0
    %1119 = vmatprep.subr.mxu0 0.0
    %1120 = vmatpush1.xpose.msra.mxu0 0.0
    %1121 = vmatprep.subr.mxu0 0.0
    %1122 = vmatpush1.xpose.msra.mxu0 0.0
    %1123 = vmatprep.subr.mxu0 0.0
    %1124 = vmatpush1.xpose.msra.mxu0 0.0
    %1125 = vmatprep.subr.mxu0 0.0
    %1126 = vmatpush1.xpose.msra.mxu0 0.0
    %1127 = vmatprep.subr.mxu0 0.0
    %1128 = vmatpush1.xpose.msra.mxu0 0.0
    %1129 = vmatprep.subr.mxu0 0.0
    %1130 = vmatpush1.xpose.msra.mxu0 0.0
    %1131 = vmatprep.subr.mxu0 0.0
    %1132 = vmatpush1.xpose.msra.mxu0 0.0
    %1133 = vmatprep.subr.mxu0 0.0
    %1134 = vmatpush1.xpose.msra.mxu0 0.0
    %1135 = vmatprep.subr.mxu0 0.0
    %1136 = vmatpush1.xpose.msra.mxu0 0.0
    %1137 = vmatprep.subr.mxu0 0.0
    %1138 = vmatpush1.xpose.msra.mxu0 0.0
    %1139 = vmatprep.subr.mxu0 0.0
    %1140 = vmatpush1.xpose.msra.mxu0 0.0
    %1141 = vmatprep.subr.mxu0 0.0
    %1142 = vmatpush1.xpose.msra.mxu0 %v1111
    %1143 = vmatprep.subr.mxu0 0.0
    %1144 = vmatpush1.xpose.msra.mxu0 %v1109
    %1145 = vmatprep.subr.mxu0 0.0
    %1146 = vmatpush2.xpose.msra.mxu0 0.0
    %1147 = vmatprep.subr.mxu0 0.0
    %1148 = vmatpush2.xpose.msra.mxu0 0.0
    %1149 = vmatprep.subr.mxu0 0.0
    %1150 = vmatpush2.xpose.msra.mxu0 0.0
    %1151 = vmatprep.subr.mxu0 0.0
    %1152 = vmatpush2.xpose.msra.mxu0 0.0
    %1153 = vmatprep.subr.mxu0 0.0
    %1154 = vmatpush2.xpose.msra.mxu0 0.0
    %1155 = vmatprep.subr.mxu0 0.0
    %1156 = vmatpush2.xpose.msra.mxu0 0.0
    %1157 = vmatprep.subr.mxu0 0.0
    %1158 = vmatpush2.xpose.msra.mxu0 0.0
    %1159 = vmatprep.subr.mxu0 0.0
    %1160 = vmatpush2.xpose.msra.mxu0 0.0
    %1161 = vmatprep.subr.mxu0 0.0
    %1162 = vmatpush2.xpose.msra.mxu0 0.0
    %1163 = vmatprep.subr.mxu0 0.0
    %1164 = vmatpush2.xpose.msra.mxu0 0.0
    %1165 = vmatprep.subr.mxu0 0.0
    %1166 = vmatpush2.xpose.msra.mxu0 0.0
    %1167 = vmatprep.subr.mxu0 0.0
    %1168 = vmatpush2.xpose.msra.mxu0 0.0
    %1169 = vmatprep.subr.mxu0 0.0
    %1170 = vmatpush2.xpose.msra.mxu0 0.0
    %1171 = vmatprep.subr.mxu0 0.0
    %1172 = vmatpush2.xpose.msra.mxu0 0.0
    %1173 = vmatprep.subr.mxu0 0.0
    %1174 = vmatpush2.xpose.msra.mxu0 0.0
    %1175 = vmatprep.subr.mxu0 0.0
    %1176 = vmatpush2.xpose.msra.mxu0 0.0
    %1177 = vmatprep.mubr.f32.mxu0 0.0
    %1178 = vmatmul.mubr.f32.gmra.mxu0 %v1107
    %v1179 = vpop.f32.mrf.mxu0
    %v1180 = vadd.f32 %v234, %v1179
    %v1181 = vpop.f32.mrf.mxu0
    %1182 = vdwg.mxu0
    %1183 = vrot.lane.b32.xlu0 %v206, 112
    %v1184 = vpop.permute.xlu0 %1183
    %1185 = vrot.lane.b32.xlu0 %v177, 80
    %v1186 = vpop.permute.xlu0 %1185
    %1187 = vrot.lane.b32.xlu0 %v182, 80
    %v1188 = vpop.permute.xlu0 %1187
    %v1189 = vsel %vm247, %v1184, 0
    %v1191 = vsel %vm247, %v1186, 0
    %v1193 = vsel %vm247, %v1188, 0
    %1195 = vmatprep.subr.mxu0 0.0
    %1196 = vmatpush1.xpose.msra.mxu0 0.0
    %1197 = vmatprep.subr.mxu0 0.0
    %1198 = vmatpush1.xpose.msra.mxu0 0.0
    %1199 = vmatprep.subr.mxu0 0.0
    %1200 = vmatpush1.xpose.msra.mxu0 0.0
    %1201 = vmatprep.subr.mxu0 0.0
    %1202 = vmatpush1.xpose.msra.mxu0 0.0
    %1203 = vmatprep.subr.mxu0 0.0
    %1204 = vmatpush1.xpose.msra.mxu0 0.0
    %1205 = vmatprep.subr.mxu0 0.0
    %1206 = vmatpush1.xpose.msra.mxu0 0.0
    %1207 = vmatprep.subr.mxu0 0.0
    %1208 = vmatpush1.xpose.msra.mxu0 0.0
    %1209 = vmatprep.subr.mxu0 0.0
    %1210 = vmatpush1.xpose.msra.mxu0 0.0
    %1211 = vmatprep.subr.mxu0 0.0
    %1212 = vmatpush1.xpose.msra.mxu0 0.0
    %1213 = vmatprep.subr.mxu0 0.0
    %1214 = vmatpush1.xpose.msra.mxu0 0.0
    %1215 = vmatprep.subr.mxu0 0.0
    %1216 = vmatpush1.xpose.msra.mxu0 0.0
    %1217 = vmatprep.subr.mxu0 0.0
    %1218 = vmatpush1.xpose.msra.mxu0 0.0
    %1219 = vmatprep.subr.mxu0 0.0
    %1220 = vmatpush1.xpose.msra.mxu0 0.0
    %1221 = vmatprep.subr.mxu0 0.0
    %1222 = vmatpush1.xpose.msra.mxu0 0.0
    %1223 = vmatprep.subr.mxu0 0.0
    %1224 = vmatpush1.xpose.msra.mxu0 %v1193
    %1225 = vmatprep.subr.mxu0 0.0
    %1226 = vmatpush1.xpose.msra.mxu0 %v1191
    %1227 = vmatprep.subr.mxu0 0.0
    %1228 = vmatpush2.xpose.msra.mxu0 0.0
    %1229 = vmatprep.subr.mxu0 0.0
    %1230 = vmatpush2.xpose.msra.mxu0 0.0
    %1231 = vmatprep.subr.mxu0 0.0
    %1232 = vmatpush2.xpose.msra.mxu0 0.0
    %1233 = vmatprep.subr.mxu0 0.0
    %1234 = vmatpush2.xpose.msra.mxu0 0.0
    %1235 = vmatprep.subr.mxu0 0.0
    %1236 = vmatpush2.xpose.msra.mxu0 0.0
    %1237 = vmatprep.subr.mxu0 0.0
    %1238 = vmatpush2.xpose.msra.mxu0 0.0
    %1239 = vmatprep.subr.mxu0 0.0
    %1240 = vmatpush2.xpose.msra.mxu0 0.0
    %1241 = vmatprep.subr.mxu0 0.0
    %1242 = vmatpush2.xpose.msra.mxu0 0.0
    %1243 = vmatprep.subr.mxu0 0.0
    %1244 = vmatpush2.xpose.msra.mxu0 0.0
    %1245 = vmatprep.subr.mxu0 0.0
    %1246 = vmatpush2.xpose.msra.mxu0 0.0
    %1247 = vmatprep.subr.mxu0 0.0
    %1248 = vmatpush2.xpose.msra.mxu0 0.0
    %1249 = vmatprep.subr.mxu0 0.0
    %1250 = vmatpush2.xpose.msra.mxu0 0.0
    %1251 = vmatprep.subr.mxu0 0.0
    %1252 = vmatpush2.xpose.msra.mxu0 0.0
    %1253 = vmatprep.subr.mxu0 0.0
    %1254 = vmatpush2.xpose.msra.mxu0 0.0
    %1255 = vmatprep.subr.mxu0 0.0
    %1256 = vmatpush2.xpose.msra.mxu0 0.0
    %1257 = vmatprep.subr.mxu0 0.0
    %1258 = vmatpush2.xpose.msra.mxu0 0.0
    %1259 = vmatprep.mubr.f32.mxu0 0.0
    %1260 = vmatmul.mubr.f32.gmra.mxu0 %v1189
    %v1261 = vpop.f32.mrf.mxu0
    %v1262 = vadd.f32 %v238, %v1261
    %v1263 = vpop.f32.mrf.mxu0
    %1264 = vdwg.mxu0
    %v1265 = vsel %vm408, %v1180, -inf
    %1266 = vmax.xlane.f32.xlu0 %v1265
    %v1267 = vpop.xlane.xlu0 %1266
    %v1268 = vsel %vm408, %v1262, -inf
    %1269 = vmax.xlane.f32.xlu0 %v1268
    %v1270 = vpop.xlane.xlu0 %1269
    %v1271 = vsub.f32 %v1180, %v1267
    %v1272 = vsub.f32 %v1262, %v1270
    %v1273 = vmul.f32 %v1271, 1.442695
    %v1274 = vpow.pop %v1273
    %v1275 = vmul.f32 %v1272, 1.442695
    %v1276 = vpow.pop %v1275
    %v1277 = vsel %vm408, %v1274, 0.0
    %1278 = vadd.xlane.f32.xlu0 %v1277
    %v1279 = vpop.xlane.xlu0 %1278
    %v1280 = vsel %vm408, %v1276, 0.0
    %1281 = vadd.xlane.f32.xlu0 %v1280
    %v1282 = vpop.xlane.xlu0 %1281
    %v1283 = vrcp.pop %v1279
    %v1284 = vrcp.pop %v1282
    %v1285 = vmul.f32 %v1274, %v1283
    %v1286 = vmul.f32 %v1276, %v1284
    %1287 = vrot.lane.b32.xlu0 %v187, 48
    %v1288 = vpop.permute.xlu0 %1287
    %1289 = vrot.lane.b32.xlu0 %v192, 48
    %v1290 = vpop.permute.xlu0 %1289
    %v1294 = vsel %vm408, %v1285, 0
    %1296 = vmatprep.subr.mxu0 0.0
    %1297 = vmatpush1.msra.mxu0 0.0
    %1298 = vmatprep.subr.mxu0 0.0
    %1299 = vmatpush1.msra.mxu0 0.0
    %1300 = vmatprep.subr.mxu0 0.0
    %1301 = vmatpush1.msra.mxu0 0.0
    %1302 = vmatprep.subr.mxu0 0.0
    %1303 = vmatpush1.msra.mxu0 0.0
    %1304 = vmatprep.subr.mxu0 0.0
    %1305 = vmatpush1.msra.mxu0 0.0
    %1306 = vmatprep.subr.mxu0 0.0
    %1307 = vmatpush1.msra.mxu0 0.0
    %1308 = vmatprep.subr.mxu0 0.0
    %1309 = vmatpush1.msra.mxu0 0.0
    %1310 = vmatprep.subr.mxu0 0.0
    %1311 = vmatpush1.msra.mxu0 0.0
    %1312 = vmatprep.subr.mxu0 0.0
    %1313 = vmatpush1.msra.mxu0 0.0
    %1314 = vmatprep.subr.mxu0 0.0
    %1315 = vmatpush1.msra.mxu0 0.0
    %1316 = vmatprep.subr.mxu0 0.0
    %1317 = vmatpush1.msra.mxu0 0.0
    %1318 = vmatprep.subr.mxu0 0.0
    %1319 = vmatpush1.msra.mxu0 0.0
    %1320 = vmatprep.subr.mxu0 0.0
    %1321 = vmatpush1.msra.mxu0 0.0
    %1322 = vmatprep.subr.mxu0 0.0
    %1323 = vmatpush1.msra.mxu0 0.0
    %1324 = vmatprep.subr.mxu0 0.0
    %1325 = vmatpush1.msra.mxu0 %v1290
    %1326 = vmatprep.subr.mxu0 0.0
    %1327 = vmatpush1.msra.mxu0 %v1288
    %1328 = vmatprep.subr.mxu0 0.0
    %1329 = vmatpush2.msra.mxu0 0.0
    %1330 = vmatprep.subr.mxu0 0.0
    %1331 = vmatpush2.msra.mxu0 0.0
    %1332 = vmatprep.subr.mxu0 0.0
    %1333 = vmatpush2.msra.mxu0 0.0
    %1334 = vmatprep.subr.mxu0 0.0
    %1335 = vmatpush2.msra.mxu0 0.0
    %1336 = vmatprep.subr.mxu0 0.0
    %1337 = vmatpush2.msra.mxu0 0.0
    %1338 = vmatprep.subr.mxu0 0.0
    %1339 = vmatpush2.msra.mxu0 0.0
    %1340 = vmatprep.subr.mxu0 0.0
    %1341 = vmatpush2.msra.mxu0 0.0
    %1342 = vmatprep.subr.mxu0 0.0
    %1343 = vmatpush2.msra.mxu0 0.0
    %1344 = vmatprep.subr.mxu0 0.0
    %1345 = vmatpush2.msra.mxu0 0.0
    %1346 = vmatprep.subr.mxu0 0.0
    %1347 = vmatpush2.msra.mxu0 0.0
    %1348 = vmatprep.subr.mxu0 0.0
    %1349 = vmatpush2.msra.mxu0 0.0
    %1350 = vmatprep.subr.mxu0 0.0
    %1351 = vmatpush2.msra.mxu0 0.0
    %1352 = vmatprep.subr.mxu0 0.0
    %1353 = vmatpush2.msra.mxu0 0.0
    %1354 = vmatprep.subr.mxu0 0.0
    %1355 = vmatpush2.msra.mxu0 0.0
    %1356 = vmatprep.subr.mxu0 0.0
    %1357 = vmatpush2.msra.mxu0 0.0
    %1358 = vmatprep.subr.mxu0 0.0
    %1359 = vmatpush2.msra.mxu0 0.0
    %1360 = vmatprep.mubr.f32.mxu0 0.0
    %1361 = vmatmul.mubr.f32.gmra.mxu0 %v1294
    %v1362 = vpop.f32.mrf.mxu0
    %v1363 = vadd.f32 0.0, %v1362
    %v1364 = vpop.f32.mrf.mxu0
    %1365 = vdwg.mxu0
    %1366 = vrot.lane.b32.xlu0 %v197, 48
    %v1367 = vpop.permute.xlu0 %1366
    %1368 = vrot.lane.b32.xlu0 %v202, 48
    %v1369 = vpop.permute.xlu0 %1368
    %v1373 = vsel %vm408, %v1286, 0
    %1375 = vmatprep.subr.mxu0 0.0
    %1376 = vmatpush1.msra.mxu0 0.0
    %1377 = vmatprep.subr.mxu0 0.0
    %1378 = vmatpush1.msra.mxu0 0.0
    %1379 = vmatprep.subr.mxu0 0.0
    %1380 = vmatpush1.msra.mxu0 0.0
    %1381 = vmatprep.subr.mxu0 0.0
    %1382 = vmatpush1.msra.mxu0 0.0
    %1383 = vmatprep.subr.mxu0 0.0
    %1384 = vmatpush1.msra.mxu0 0.0
    %1385 = vmatprep.subr.mxu0 0.0
    %1386 = vmatpush1.msra.mxu0 0.0
    %1387 = vmatprep.subr.mxu0 0.0
    %1388 = vmatpush1.msra.mxu0 0.0
    %1389 = vmatprep.subr.mxu0 0.0
    %1390 = vmatpush1.msra.mxu0 0.0
    %1391 = vmatprep.subr.mxu0 0.0
    %1392 = vmatpush1.msra.mxu0 0.0
    %1393 = vmatprep.subr.mxu0 0.0
    %1394 = vmatpush1.msra.mxu0 0.0
    %1395 = vmatprep.subr.mxu0 0.0
    %1396 = vmatpush1.msra.mxu0 0.0
    %1397 = vmatprep.subr.mxu0 0.0
    %1398 = vmatpush1.msra.mxu0 0.0
    %1399 = vmatprep.subr.mxu0 0.0
    %1400 = vmatpush1.msra.mxu0 0.0
    %1401 = vmatprep.subr.mxu0 0.0
    %1402 = vmatpush1.msra.mxu0 0.0
    %1403 = vmatprep.subr.mxu0 0.0
    %1404 = vmatpush1.msra.mxu0 %v1369
    %1405 = vmatprep.subr.mxu0 0.0
    %1406 = vmatpush1.msra.mxu0 %v1367
    %1407 = vmatprep.subr.mxu0 0.0
    %1408 = vmatpush2.msra.mxu0 0.0
    %1409 = vmatprep.subr.mxu0 0.0
    %1410 = vmatpush2.msra.mxu0 0.0
    %1411 = vmatprep.subr.mxu0 0.0
    %1412 = vmatpush2.msra.mxu0 0.0
    %1413 = vmatprep.subr.mxu0 0.0
    %1414 = vmatpush2.msra.mxu0 0.0
    %1415 = vmatprep.subr.mxu0 0.0
    %1416 = vmatpush2.msra.mxu0 0.0
    %1417 = vmatprep.subr.mxu0 0.0
    %1418 = vmatpush2.msra.mxu0 0.0
    %1419 = vmatprep.subr.mxu0 0.0
    %1420 = vmatpush2.msra.mxu0 0.0
    %1421 = vmatprep.subr.mxu0 0.0
    %1422 = vmatpush2.msra.mxu0 0.0
    %1423 = vmatprep.subr.mxu0 0.0
    %1424 = vmatpush2.msra.mxu0 0.0
    %1425 = vmatprep.subr.mxu0 0.0
    %1426 = vmatpush2.msra.mxu0 0.0
    %1427 = vmatprep.subr.mxu0 0.0
    %1428 = vmatpush2.msra.mxu0 0.0
    %1429 = vmatprep.subr.mxu0 0.0
    %1430 = vmatpush2.msra.mxu0 0.0
    %1431 = vmatprep.subr.mxu0 0.0
    %1432 = vmatpush2.msra.mxu0 0.0
    %1433 = vmatprep.subr.mxu0 0.0
    %1434 = vmatpush2.msra.mxu0 0.0
    %1435 = vmatprep.subr.mxu0 0.0
    %1436 = vmatpush2.msra.mxu0 0.0
    %1437 = vmatprep.subr.mxu0 0.0
    %1438 = vmatpush2.msra.mxu0 0.0
    %1439 = vmatprep.mubr.f32.mxu0 0.0
    %1440 = vmatmul.mubr.f32.gmra.mxu0 %v1373
    %v1441 = vpop.f32.mrf.mxu0
    %v1442 = vadd.f32 0.0, %v1441
    %v1443 = vpop.f32.mrf.mxu0
    %1444 = vdwg.mxu0
    %v1446 = vsel %vm247, %v1363, 0
    %v1449 = vsel %vm247, %v1442, 0
    %1451 = vmatprep.subr.mxu0 0.0
    %1452 = vmatpush1.msra.mxu0 0.0
    %1453 = vmatprep.subr.mxu0 0.0
    %1454 = vmatpush1.msra.mxu0 0.0
    %1455 = vmatprep.subr.mxu0 0.0
    %1456 = vmatpush1.msra.mxu0 0.0
    %1457 = vmatprep.subr.mxu0 0.0
    %1458 = vmatpush1.msra.mxu0 0.0
    %1459 = vmatprep.subr.mxu0 0.0
    %1460 = vmatpush1.msra.mxu0 0.0
    %1461 = vmatprep.subr.mxu0 0.0
    %1462 = vmatpush1.msra.mxu0 0.0
    %1463 = vmatprep.subr.mxu0 0.0
    %1464 = vmatpush1.msra.mxu0 0.0
    %1465 = vmatprep.subr.mxu0 0.0
    %1466 = vmatpush1.msra.mxu0 0.0
    %1467 = vmatprep.subr.mxu0 0.0
    %1468 = vmatpush1.msra.mxu0 0.0
    %1469 = vmatprep.subr.mxu0 0.0
    %1470 = vmatpush1.msra.mxu0 0.0
    %1471 = vmatprep.subr.mxu0 0.0
    %1472 = vmatpush1.msra.mxu0 0.0
    %1473 = vmatprep.subr.mxu0 0.0
    %1474 = vmatpush1.msra.mxu0 0.0
    %1475 = vmatprep.subr.mxu0 0.0
    %1476 = vmatpush1.msra.mxu0 0.0
    %1477 = vmatprep.subr.mxu0 0.0
    %1478 = vmatpush1.msra.mxu0 0.0
    %1479 = vmatprep.subr.mxu0 0.0
    %1480 = vmatpush1.msra.mxu0 0.0
    %1481 = vmatprep.subr.mxu0 0.0
    %1482 = vmatpush1.msra.mxu0 %v31
    %1483 = vmatprep.subr.mxu0 0.0
    %1484 = vmatpush2.msra.mxu0 0.0
    %1485 = vmatprep.subr.mxu0 0.0
    %1486 = vmatpush2.msra.mxu0 0.0
    %1487 = vmatprep.subr.mxu0 0.0
    %1488 = vmatpush2.msra.mxu0 0.0
    %1489 = vmatprep.subr.mxu0 0.0
    %1490 = vmatpush2.msra.mxu0 0.0
    %1491 = vmatprep.subr.mxu0 0.0
    %1492 = vmatpush2.msra.mxu0 0.0
    %1493 = vmatprep.subr.mxu0 0.0
    %1494 = vmatpush2.msra.mxu0 0.0
    %1495 = vmatprep.subr.mxu0 0.0
    %1496 = vmatpush2.msra.mxu0 0.0
    %1497 = vmatprep.subr.mxu0 0.0
    %1498 = vmatpush2.msra.mxu0 0.0
    %1499 = vmatprep.subr.mxu0 0.0
    %1500 = vmatpush2.msra.mxu0 0.0
    %1501 = vmatprep.subr.mxu0 0.0
    %1502 = vmatpush2.msra.mxu0 0.0
    %1503 = vmatprep.subr.mxu0 0.0
    %1504 = vmatpush2.msra.mxu0 0.0
    %1505 = vmatprep.subr.mxu0 0.0
    %1506 = vmatpush2.msra.mxu0 0.0
    %1507 = vmatprep.subr.mxu0 0.0
    %1508 = vmatpush2.msra.mxu0 0.0
    %1509 = vmatprep.subr.mxu0 0.0
    %1510 = vmatpush2.msra.mxu0 0.0
    %1511 = vmatprep.subr.mxu0 0.0
    %1512 = vmatpush2.msra.mxu0 0.0
    %1513 = vmatprep.subr.mxu0 0.0
    %1514 = vmatpush2.msra.mxu0 0.0
    %1515 = vmatprep.mubr.f32.mxu0 0.0
    %1516 = vmatmul.mubr.f32.gmra.mxu0 %v1446
    %v1517 = vpop.f32.mrf.mxu0
    %v1518 = vadd.f32 0.0, %v1517
    %v1519 = vpop.f32.mrf.mxu0
    %1520 = vmatprep.mubr.f32.mxu0 0.0
    %1521 = vmatmul.mubr.f32.gmra.mxu0 %v1449
    %v1522 = vpop.f32.mrf.mxu0
    %v1523 = vadd.f32 0.0, %v1522
    %v1524 = vpop.f32.mrf.mxu0
    %1525 = vdwg.mxu0
    %v1526 = vadd.f32 %v1091, %v1518
    %v1527 = vadd.f32 %v1096, %v1523
    %v1528 = vadd.f32 %v1099, %v1285
    %v1529 = vadd.f32 %v1100, %v1286
    %1530 = vrot.lane.b32.xlu0 %v205, 104
    %v1531 = vpop.permute.xlu0 %1530
    %1532 = vrot.lane.b32.xlu0 %v167, 72
    %v1533 = vpop.permute.xlu0 %1532
    %1534 = vrot.lane.b32.xlu0 %v172, 72
    %v1535 = vpop.permute.xlu0 %1534
    %v1536 = vsel %vm247, %v1531, 0
    %v1538 = vsel %vm247, %v1533, 0
    %v1540 = vsel %vm247, %v1535, 0
    %1542 = vmatprep.subr.mxu0 0.0
    %1543 = vmatpush1.xpose.msra.mxu0 0.0
    %1544 = vmatprep.subr.mxu0 0.0
    %1545 = vmatpush1.xpose.msra.mxu0 0.0
    %1546 = vmatprep.subr.mxu0 0.0
    %1547 = vmatpush1.xpose.msra.mxu0 0.0
    %1548 = vmatprep.subr.mxu0 0.0
    %1549 = vmatpush1.xpose.msra.mxu0 0.0
    %1550 = vmatprep.subr.mxu0 0.0
    %1551 = vmatpush1.xpose.msra.mxu0 0.0
    %1552 = vmatprep.subr.mxu0 0.0
    %1553 = vmatpush1.xpose.msra.mxu0 0.0
    %1554 = vmatprep.subr.mxu0 0.0
    %1555 = vmatpush1.xpose.msra.mxu0 0.0
    %1556 = vmatprep.subr.mxu0 0.0
    %1557 = vmatpush1.xpose.msra.mxu0 0.0
    %1558 = vmatprep.subr.mxu0 0.0
    %1559 = vmatpush1.xpose.msra.mxu0 0.0
    %1560 = vmatprep.subr.mxu0 0.0
    %1561 = vmatpush1.xpose.msra.mxu0 0.0
    %1562 = vmatprep.subr.mxu0 0.0
    %1563 = vmatpush1.xpose.msra.mxu0 0.0
    %1564 = vmatprep.subr.mxu0 0.0
    %1565 = vmatpush1.xpose.msra.mxu0 0.0
    %1566 = vmatprep.subr.mxu0 0.0
    %1567 = vmatpush1.xpose.msra.mxu0 0.0
    %1568 = vmatprep.subr.mxu0 0.0
    %1569 = vmatpush1.xpose.msra.mxu0 0.0
    %1570 = vmatprep.subr.mxu0 0.0
    %1571 = vmatpush1.xpose.msra.mxu0 %v1540
    %1572 = vmatprep.subr.mxu0 0.0
    %1573 = vmatpush1.xpose.msra.mxu0 %v1538
    %1574 = vmatprep.subr.mxu0 0.0
    %1575 = vmatpush2.xpose.msra.mxu0 0.0
    %1576 = vmatprep.subr.mxu0 0.0
    %1577 = vmatpush2.xpose.msra.mxu0 0.0
    %1578 = vmatprep.subr.mxu0 0.0
    %1579 = vmatpush2.xpose.msra.mxu0 0.0
    %1580 = vmatprep.subr.mxu0 0.0
    %1581 = vmatpush2.xpose.msra.mxu0 0.0
    %1582 = vmatprep.subr.mxu0 0.0
    %1583 = vmatpush2.xpose.msra.mxu0 0.0
    %1584 = vmatprep.subr.mxu0 0.0
    %1585 = vmatpush2.xpose.msra.mxu0 0.0
    %1586 = vmatprep.subr.mxu0 0.0
    %1587 = vmatpush2.xpose.msra.mxu0 0.0
    %1588 = vmatprep.subr.mxu0 0.0
    %1589 = vmatpush2.xpose.msra.mxu0 0.0
    %1590 = vmatprep.subr.mxu0 0.0
    %1591 = vmatpush2.xpose.msra.mxu0 0.0
    %1592 = vmatprep.subr.mxu0 0.0
    %1593 = vmatpush2.xpose.msra.mxu0 0.0
    %1594 = vmatprep.subr.mxu0 0.0
    %1595 = vmatpush2.xpose.msra.mxu0 0.0
    %1596 = vmatprep.subr.mxu0 0.0
    %1597 = vmatpush2.xpose.msra.mxu0 0.0
    %1598 = vmatprep.subr.mxu0 0.0
    %1599 = vmatpush2.xpose.msra.mxu0 0.0
    %1600 = vmatprep.subr.mxu0 0.0
    %1601 = vmatpush2.xpose.msra.mxu0 0.0
    %1602 = vmatprep.subr.mxu0 0.0
    %1603 = vmatpush2.xpose.msra.mxu0 0.0
    %1604 = vmatprep.subr.mxu0 0.0
    %1605 = vmatpush2.xpose.msra.mxu0 0.0
    %1606 = vmatprep.mubr.f32.mxu0 0.0
    %1607 = vmatmul.mubr.f32.gmra.mxu0 %v1536
    %v1608 = vpop.f32.mrf.mxu0
    %v1609 = vadd.f32 %v234, %v1608
    %v1610 = vpop.f32.mrf.mxu0
    %1611 = vdwg.mxu0
    %1612 = vrot.lane.b32.xlu0 %v206, 104
    %v1613 = vpop.permute.xlu0 %1612
    %1614 = vrot.lane.b32.xlu0 %v177, 72
    %v1615 = vpop.permute.xlu0 %1614
    %1616 = vrot.lane.b32.xlu0 %v182, 72
    %v1617 = vpop.permute.xlu0 %1616
    %v1618 = vsel %vm247, %v1613, 0
    %v1620 = vsel %vm247, %v1615, 0
    %v1622 = vsel %vm247, %v1617, 0
    %1624 = vmatprep.subr.mxu0 0.0
    %1625 = vmatpush1.xpose.msra.mxu0 0.0
    %1626 = vmatprep.subr.mxu0 0.0
    %1627 = vmatpush1.xpose.msra.mxu0 0.0
    %1628 = vmatprep.subr.mxu0 0.0
    %1629 = vmatpush1.xpose.msra.mxu0 0.0
    %1630 = vmatprep.subr.mxu0 0.0
    %1631 = vmatpush1.xpose.msra.mxu0 0.0
    %1632 = vmatprep.subr.mxu0 0.0
    %1633 = vmatpush1.xpose.msra.mxu0 0.0
    %1634 = vmatprep.subr.mxu0 0.0
    %1635 = vmatpush1.xpose.msra.mxu0 0.0
    %1636 = vmatprep.subr.mxu0 0.0
    %1637 = vmatpush1.xpose.msra.mxu0 0.0
    %1638 = vmatprep.subr.mxu0 0.0
    %1639 = vmatpush1.xpose.msra.mxu0 0.0
    %1640 = vmatprep.subr.mxu0 0.0
    %1641 = vmatpush1.xpose.msra.mxu0 0.0
    %1642 = vmatprep.subr.mxu0 0.0
    %1643 = vmatpush1.xpose.msra.mxu0 0.0
    %1644 = vmatprep.subr.mxu0 0.0
    %1645 = vmatpush1.xpose.msra.mxu0 0.0
    %1646 = vmatprep.subr.mxu0 0.0
    %1647 = vmatpush1.xpose.msra.mxu0 0.0
    %1648 = vmatprep.subr.mxu0 0.0
    %1649 = vmatpush1.xpose.msra.mxu0 0.0
    %1650 = vmatprep.subr.mxu0 0.0
    %1651 = vmatpush1.xpose.msra.mxu0 0.0
    %1652 = vmatprep.subr.mxu0 0.0
    %1653 = vmatpush1.xpose.msra.mxu0 %v1622
    %1654 = vmatprep.subr.mxu0 0.0
    %1655 = vmatpush1.xpose.msra.mxu0 %v1620
    %1656 = vmatprep.subr.mxu0 0.0
    %1657 = vmatpush2.xpose.msra.mxu0 0.0
    %1658 = vmatprep.subr.mxu0 0.0
    %1659 = vmatpush2.xpose.msra.mxu0 0.0
    %1660 = vmatprep.subr.mxu0 0.0
    %1661 = vmatpush2.xpose.msra.mxu0 0.0
    %1662 = vmatprep.subr.mxu0 0.0
    %1663 = vmatpush2.xpose.msra.mxu0 0.0
    %1664 = vmatprep.subr.mxu0 0.0
    %1665 = vmatpush2.xpose.msra.mxu0 0.0
    %1666 = vmatprep.subr.mxu0 0.0
    %1667 = vmatpush2.xpose.msra.mxu0 0.0
    %1668 = vmatprep.subr.mxu0 0.0
    %1669 = vmatpush2.xpose.msra.mxu0 0.0
    %1670 = vmatprep.subr.mxu0 0.0
    %1671 = vmatpush2.xpose.msra.mxu0 0.0
    %1672 = vmatprep.subr.mxu0 0.0
    %1673 = vmatpush2.xpose.msra.mxu0 0.0
    %1674 = vmatprep.subr.mxu0 0.0
    %1675 = vmatpush2.xpose.msra.mxu0 0.0
    %1676 = vmatprep.subr.mxu0 0.0
    %1677 = vmatpush2.xpose.msra.mxu0 0.0
    %1678 = vmatprep.subr.mxu0 0.0
    %1679 = vmatpush2.xpose.msra.mxu0 0.0
    %1680 = vmatprep.subr.mxu0 0.0
    %1681 = vmatpush2.xpose.msra.mxu0 0.0
    %1682 = vmatprep.subr.mxu0 0.0
    %1683 = vmatpush2.xpose.msra.mxu0 0.0
    %1684 = vmatprep.subr.mxu0 0.0
    %1685 = vmatpush2.xpose.msra.mxu0 0.0
    %1686 = vmatprep.subr.mxu0 0.0
    %1687 = vmatpush2.xpose.msra.mxu0 0.0
    %1688 = vmatprep.mubr.f32.mxu0 0.0
    %1689 = vmatmul.mubr.f32.gmra.mxu0 %v1618
    %v1690 = vpop.f32.mrf.mxu0
    %v1691 = vadd.f32 %v238, %v1690
    %v1692 = vpop.f32.mrf.mxu0
    %1693 = vdwg.mxu0
    %v1694 = vsel %vm408, %v1609, -inf
    %1695 = vmax.xlane.f32.xlu0 %v1694
    %v1696 = vpop.xlane.xlu0 %1695
    %v1697 = vsel %vm408, %v1691, -inf
    %1698 = vmax.xlane.f32.xlu0 %v1697
    %v1699 = vpop.xlane.xlu0 %1698
    %v1700 = vsub.f32 %v1609, %v1696
    %v1701 = vsub.f32 %v1691, %v1699
    %v1702 = vmul.f32 %v1700, 1.442695
    %v1703 = vpow.pop %v1702
    %v1704 = vmul.f32 %v1701, 1.442695
    %v1705 = vpow.pop %v1704
    %v1706 = vsel %vm408, %v1703, 0.0
    %1707 = vadd.xlane.f32.xlu0 %v1706
    %v1708 = vpop.xlane.xlu0 %1707
    %v1709 = vsel %vm408, %v1705, 0.0
    %1710 = vadd.xlane.f32.xlu0 %v1709
    %v1711 = vpop.xlane.xlu0 %1710
    %v1712 = vrcp.pop %v1708
    %v1713 = vrcp.pop %v1711
    %v1714 = vmul.f32 %v1703, %v1712
    %v1715 = vmul.f32 %v1705, %v1713
    %1716 = vrot.lane.b32.xlu0 %v187, 40
    %v1717 = vpop.permute.xlu0 %1716
    %1718 = vrot.lane.b32.xlu0 %v192, 40
    %v1719 = vpop.permute.xlu0 %1718
    %v1723 = vsel %vm408, %v1714, 0
    %1725 = vmatprep.subr.mxu0 0.0
    %1726 = vmatpush1.msra.mxu0 0.0
    %1727 = vmatprep.subr.mxu0 0.0
    %1728 = vmatpush1.msra.mxu0 0.0
    %1729 = vmatprep.subr.mxu0 0.0
    %1730 = vmatpush1.msra.mxu0 0.0
    %1731 = vmatprep.subr.mxu0 0.0
    %1732 = vmatpush1.msra.mxu0 0.0
    %1733 = vmatprep.subr.mxu0 0.0
    %1734 = vmatpush1.msra.mxu0 0.0
    %1735 = vmatprep.subr.mxu0 0.0
    %1736 = vmatpush1.msra.mxu0 0.0
    %1737 = vmatprep.subr.mxu0 0.0
    %1738 = vmatpush1.msra.mxu0 0.0
    %1739 = vmatprep.subr.mxu0 0.0
    %1740 = vmatpush1.msra.mxu0 0.0
    %1741 = vmatprep.subr.mxu0 0.0
    %1742 = vmatpush1.msra.mxu0 0.0
    %1743 = vmatprep.subr.mxu0 0.0
    %1744 = vmatpush1.msra.mxu0 0.0
    %1745 = vmatprep.subr.mxu0 0.0
    %1746 = vmatpush1.msra.mxu0 0.0
    %1747 = vmatprep.subr.mxu0 0.0
    %1748 = vmatpush1.msra.mxu0 0.0
    %1749 = vmatprep.subr.mxu0 0.0
    %1750 = vmatpush1.msra.mxu0 0.0
    %1751 = vmatprep.subr.mxu0 0.0
    %1752 = vmatpush1.msra.mxu0 0.0
    %1753 = vmatprep.subr.mxu0 0.0
    %1754 = vmatpush1.msra.mxu0 %v1719
    %1755 = vmatprep.subr.mxu0 0.0
    %1756 = vmatpush1.msra.mxu0 %v1717
    %1757 = vmatprep.subr.mxu0 0.0
    %1758 = vmatpush2.msra.mxu0 0.0
    %1759 = vmatprep.subr.mxu0 0.0
    %1760 = vmatpush2.msra.mxu0 0.0
    %1761 = vmatprep.subr.mxu0 0.0
    %1762 = vmatpush2.msra.mxu0 0.0
    %1763 = vmatprep.subr.mxu0 0.0
    %1764 = vmatpush2.msra.mxu0 0.0
    %1765 = vmatprep.subr.mxu0 0.0
    %1766 = vmatpush2.msra.mxu0 0.0
    %1767 = vmatprep.subr.mxu0 0.0
    %1768 = vmatpush2.msra.mxu0 0.0
    %1769 = vmatprep.subr.mxu0 0.0
    %1770 = vmatpush2.msra.mxu0 0.0
    %1771 = vmatprep.subr.mxu0 0.0
    %1772 = vmatpush2.msra.mxu0 0.0
    %1773 = vmatprep.subr.mxu0 0.0
    %1774 = vmatpush2.msra.mxu0 0.0
    %1775 = vmatprep.subr.mxu0 0.0
    %1776 = vmatpush2.msra.mxu0 0.0
    %1777 = vmatprep.subr.mxu0 0.0
    %1778 = vmatpush2.msra.mxu0 0.0
    %1779 = vmatprep.subr.mxu0 0.0
    %1780 = vmatpush2.msra.mxu0 0.0
    %1781 = vmatprep.subr.mxu0 0.0
    %1782 = vmatpush2.msra.mxu0 0.0
    %1783 = vmatprep.subr.mxu0 0.0
    %1784 = vmatpush2.msra.mxu0 0.0
    %1785 = vmatprep.subr.mxu0 0.0
    %1786 = vmatpush2.msra.mxu0 0.0
    %1787 = vmatprep.subr.mxu0 0.0
    %1788 = vmatpush2.msra.mxu0 0.0
    %1789 = vmatprep.mubr.f32.mxu0 0.0
    %1790 = vmatmul.mubr.f32.gmra.mxu0 %v1723
    %v1791 = vpop.f32.mrf.mxu0
    %v1792 = vadd.f32 0.0, %v1791
    %v1793 = vpop.f32.mrf.mxu0
    %1794 = vdwg.mxu0
    %1795 = vrot.lane.b32.xlu0 %v197, 40
    %v1796 = vpop.permute.xlu0 %1795
    %1797 = vrot.lane.b32.xlu0 %v202, 40
    %v1798 = vpop.permute.xlu0 %1797
    %v1802 = vsel %vm408, %v1715, 0
    %1804 = vmatprep.subr.mxu0 0.0
    %1805 = vmatpush1.msra.mxu0 0.0
    %1806 = vmatprep.subr.mxu0 0.0
    %1807 = vmatpush1.msra.mxu0 0.0
    %1808 = vmatprep.subr.mxu0 0.0
    %1809 = vmatpush1.msra.mxu0 0.0
    %1810 = vmatprep.subr.mxu0 0.0
    %1811 = vmatpush1.msra.mxu0 0.0
    %1812 = vmatprep.subr.mxu0 0.0
    %1813 = vmatpush1.msra.mxu0 0.0
    %1814 = vmatprep.subr.mxu0 0.0
    %1815 = vmatpush1.msra.mxu0 0.0
    %1816 = vmatprep.subr.mxu0 0.0
    %1817 = vmatpush1.msra.mxu0 0.0
    %1818 = vmatprep.subr.mxu0 0.0
    %1819 = vmatpush1.msra.mxu0 0.0
    %1820 = vmatprep.subr.mxu0 0.0
    %1821 = vmatpush1.msra.mxu0 0.0
    %1822 = vmatprep.subr.mxu0 0.0
    %1823 = vmatpush1.msra.mxu0 0.0
    %1824 = vmatprep.subr.mxu0 0.0
    %1825 = vmatpush1.msra.mxu0 0.0
    %1826 = vmatprep.subr.mxu0 0.0
    %1827 = vmatpush1.msra.mxu0 0.0
    %1828 = vmatprep.subr.mxu0 0.0
    %1829 = vmatpush1.msra.mxu0 0.0
    %1830 = vmatprep.subr.mxu0 0.0
    %1831 = vmatpush1.msra.mxu0 0.0
    %1832 = vmatprep.subr.mxu0 0.0
    %1833 = vmatpush1.msra.mxu0 %v1798
    %1834 = vmatprep.subr.mxu0 0.0
    %1835 = vmatpush1.msra.mxu0 %v1796
    %1836 = vmatprep.subr.mxu0 0.0
    %1837 = vmatpush2.msra.mxu0 0.0
    %1838 = vmatprep.subr.mxu0 0.0
    %1839 = vmatpush2.msra.mxu0 0.0
    %1840 = vmatprep.subr.mxu0 0.0
    %1841 = vmatpush2.msra.mxu0 0.0
    %1842 = vmatprep.subr.mxu0 0.0
    %1843 = vmatpush2.msra.mxu0 0.0
    %1844 = vmatprep.subr.mxu0 0.0
    %1845 = vmatpush2.msra.mxu0 0.0
    %1846 = vmatprep.subr.mxu0 0.0
    %1847 = vmatpush2.msra.mxu0 0.0
    %1848 = vmatprep.subr.mxu0 0.0
    %1849 = vmatpush2.msra.mxu0 0.0
    %1850 = vmatprep.subr.mxu0 0.0
    %1851 = vmatpush2.msra.mxu0 0.0
    %1852 = vmatprep.subr.mxu0 0.0
    %1853 = vmatpush2.msra.mxu0 0.0
    %1854 = vmatprep.subr.mxu0 0.0
    %1855 = vmatpush2.msra.mxu0 0.0
    %1856 = vmatprep.subr.mxu0 0.0
    %1857 = vmatpush2.msra.mxu0 0.0
    %1858 = vmatprep.subr.mxu0 0.0
    %1859 = vmatpush2.msra.mxu0 0.0
    %1860 = vmatprep.subr.mxu0 0.0
    %1861 = vmatpush2.msra.mxu0 0.0
    %1862 = vmatprep.subr.mxu0 0.0
    %1863 = vmatpush2.msra.mxu0 0.0
    %1864 = vmatprep.subr.mxu0 0.0
    %1865 = vmatpush2.msra.mxu0 0.0
    %1866 = vmatprep.subr.mxu0 0.0
    %1867 = vmatpush2.msra.mxu0 0.0
    %1868 = vmatprep.mubr.f32.mxu0 0.0
    %1869 = vmatmul.mubr.f32.gmra.mxu0 %v1802
    %v1870 = vpop.f32.mrf.mxu0
    %v1871 = vadd.f32 0.0, %v1870
    %v1872 = vpop.f32.mrf.mxu0
    %1873 = vdwg.mxu0
    %v1875 = vsel %vm247, %v1792, 0
    %v1878 = vsel %vm247, %v1871, 0
    %1880 = vmatprep.subr.mxu0 0.0
    %1881 = vmatpush1.msra.mxu0 0.0
    %1882 = vmatprep.subr.mxu0 0.0
    %1883 = vmatpush1.msra.mxu0 0.0
    %1884 = vmatprep.subr.mxu0 0.0
    %1885 = vmatpush1.msra.mxu0 0.0
    %1886 = vmatprep.subr.mxu0 0.0
    %1887 = vmatpush1.msra.mxu0 0.0
    %1888 = vmatprep.subr.mxu0 0.0
    %1889 = vmatpush1.msra.mxu0 0.0
    %1890 = vmatprep.subr.mxu0 0.0
    %1891 = vmatpush1.msra.mxu0 0.0
    %1892 = vmatprep.subr.mxu0 0.0
    %1893 = vmatpush1.msra.mxu0 0.0
    %1894 = vmatprep.subr.mxu0 0.0
    %1895 = vmatpush1.msra.mxu0 0.0
    %1896 = vmatprep.subr.mxu0 0.0
    %1897 = vmatpush1.msra.mxu0 0.0
    %1898 = vmatprep.subr.mxu0 0.0
    %1899 = vmatpush1.msra.mxu0 0.0
    %1900 = vmatprep.subr.mxu0 0.0
    %1901 = vmatpush1.msra.mxu0 0.0
    %1902 = vmatprep.subr.mxu0 0.0
    %1903 = vmatpush1.msra.mxu0 0.0
    %1904 = vmatprep.subr.mxu0 0.0
    %1905 = vmatpush1.msra.mxu0 0.0
    %1906 = vmatprep.subr.mxu0 0.0
    %1907 = vmatpush1.msra.mxu0 0.0
    %1908 = vmatprep.subr.mxu0 0.0
    %1909 = vmatpush1.msra.mxu0 0.0
    %1910 = vmatprep.subr.mxu0 0.0
    %1911 = vmatpush1.msra.mxu0 %v32
    %1912 = vmatprep.subr.mxu0 0.0
    %1913 = vmatpush2.msra.mxu0 0.0
    %1914 = vmatprep.subr.mxu0 0.0
    %1915 = vmatpush2.msra.mxu0 0.0
    %1916 = vmatprep.subr.mxu0 0.0
    %1917 = vmatpush2.msra.mxu0 0.0
    %1918 = vmatprep.subr.mxu0 0.0
    %1919 = vmatpush2.msra.mxu0 0.0
    %1920 = vmatprep.subr.mxu0 0.0
    %1921 = vmatpush2.msra.mxu0 0.0
    %1922 = vmatprep.subr.mxu0 0.0
    %1923 = vmatpush2.msra.mxu0 0.0
    %1924 = vmatprep.subr.mxu0 0.0
    %1925 = vmatpush2.msra.mxu0 0.0
    %1926 = vmatprep.subr.mxu0 0.0
    %1927 = vmatpush2.msra.mxu0 0.0
    %1928 = vmatprep.subr.mxu0 0.0
    %1929 = vmatpush2.msra.mxu0 0.0
    %1930 = vmatprep.subr.mxu0 0.0
    %1931 = vmatpush2.msra.mxu0 0.0
    %1932 = vmatprep.subr.mxu0 0.0
    %1933 = vmatpush2.msra.mxu0 0.0
    %1934 = vmatprep.subr.mxu0 0.0
    %1935 = vmatpush2.msra.mxu0 0.0
    %1936 = vmatprep.subr.mxu0 0.0
    %1937 = vmatpush2.msra.mxu0 0.0
    %1938 = vmatprep.subr.mxu0 0.0
    %1939 = vmatpush2.msra.mxu0 0.0
    %1940 = vmatprep.subr.mxu0 0.0
    %1941 = vmatpush2.msra.mxu0 0.0
    %1942 = vmatprep.subr.mxu0 0.0
    %1943 = vmatpush2.msra.mxu0 0.0
    %1944 = vmatprep.mubr.f32.mxu0 0.0
    %1945 = vmatmul.mubr.f32.gmra.mxu0 %v1875
    %v1946 = vpop.f32.mrf.mxu0
    %v1947 = vadd.f32 0.0, %v1946
    %v1948 = vpop.f32.mrf.mxu0
    %1949 = vmatprep.mubr.f32.mxu0 0.0
    %1950 = vmatmul.mubr.f32.gmra.mxu0 %v1878
    %v1951 = vpop.f32.mrf.mxu0
    %v1952 = vadd.f32 0.0, %v1951
    %v1953 = vpop.f32.mrf.mxu0
    %1954 = vdwg.mxu0
    %v1955 = vadd.f32 %v1526, %v1947
    %v1956 = vadd.f32 %v1527, %v1952
    %v1957 = vadd.f32 %v1528, %v1714
    %v1958 = vadd.f32 %v1529, %v1715
    %v1959 = vlaneseq
    %v1960 = vshrl.u32 %v1959, 7
    %v1961 = vsub.s32 2, %v1960
    %v1962 = vrot.slane %v28, %v1961
    %v1963 = vadd.f32 %v1955, %v1962
    %v1964 = vadd.f32 %v1956, %v1962
    %v1965 = vmul.f32 %v1957, 0.25
    %v1966 = vmul.f32 %v1958, 0.25
    %1967 = vst.msk [vmem:[#allocation2] sm:$0xff] %vm408, %v1965
    %1968 = vst.msk [vmem:[#allocation2 + $0x8] sm:$0xff] %vm408, %v1966
    %v1969 = vld [vmem:[%s0 + $0x50] sm:$0xff]
    %v1970 = vld [vmem:[%s0 + $0x58] sm:$0xff]
    %v1971 = vadd.f32 %v1969, %v1963
    %v1972 = vadd.f32 %v1970, %v1964
    %v1973 = vsel %vm59, %v1971, 0.0
    %1974 = vadd.xlane.f32.xlu0 %v1973
    %v1975 = vpop.xlane.xlu0 %1974
    %v1976 = vsel %vm59, %v1972, 0.0
    %1977 = vadd.xlane.f32.xlu0 %v1976
    %v1978 = vpop.xlane.xlu0 %1977
    %v1979 = vrcp.pop 32.0
    %v1980 = vmul.f32 %v1975, %v1979
    %v1981 = vmul.f32 %v1978, %v1979
    %v1982 = vsub.f32 %v1971, %v1980
    %v1983 = vsub.f32 %v1972, %v1981
    %v1984 = vmul.f32 %v1982, %v1982
    %v1985 = vmul.f32 %v1983, %v1983
    %v1986 = vsel %vm59, %v1984, 0.0
    %1987 = vadd.xlane.f32.xlu0 %v1986
    %v1988 = vpop.xlane.xlu0 %1987
    %v1989 = vsel %vm59, %v1985, 0.0
    %1990 = vadd.xlane.f32.xlu0 %v1989
    %v1991 = vpop.xlane.xlu0 %1990
    %v1992 = vmul.f32 %v1988, %v1979
    %v1993 = vmul.f32 %v1991, %v1979
    %v1994 = vadd.f32 %v1992, 1e-05
    %v1995 = vadd.f32 %v1993, 1e-05
    %v1996 = vrsqrt.pop %v1994
    %v1997 = vrsqrt.pop %v1995
    %v1998 = vmul.f32 %v1982, %v1996
    %v1999 = vmul.f32 %v1983, %v1997
    %v2000 = vlaneseq
    %v2001 = vshrl.u32 %v2000, 7
    %v2002 = vsub.s32 4, %v2001
    %v2003 = vrot.slane %v28, %v2002
    %v2004 = vmul.f32 %v1998, %v2003
    %v2005 = vmul.f32 %v1999, %v2003
    %v2006 = vlaneseq
    %v2007 = vshrl.u32 %v2006, 7
    %v2008 = vsub.s32 5, %v2007
    %v2009 = vrot.slane %v28, %v2008
    %v2010 = vadd.f32 %v2004, %v2009
    %v2011 = vadd.f32 %v2005, %v2009
    %v2012 = vlaneseq
    %v2013 = vshrl.u32 %v2012, 7
    %v2014 = vsub.s32 1, %v2013
    %v2015 = vrot.slane %v28, %v2014
    %v2017 = vsel %vm59, %v2010, 0
    %v2020 = vsel %vm59, %v2011, 0
    %2022 = vmatprep.subr.mxu0 0.0
    %2023 = vmatpush1.msra.mxu0 0.0
    %2024 = vmatprep.subr.mxu0 0.0
    %2025 = vmatpush1.msra.mxu0 0.0
    %2026 = vmatprep.subr.mxu0 0.0
    %2027 = vmatpush1.msra.mxu0 0.0
    %2028 = vmatprep.subr.mxu0 0.0
    %2029 = vmatpush1.msra.mxu0 0.0
    %2030 = vmatprep.subr.mxu0 0.0
    %2031 = vmatpush1.msra.mxu0 0.0
    %2032 = vmatprep.subr.mxu0 0.0
    %2033 = vmatpush1.msra.mxu0 0.0
    %2034 = vmatprep.subr.mxu0 0.0
    %2035 = vmatpush1.msra.mxu0 0.0
    %2036 = vmatprep.subr.mxu0 0.0
    %2037 = vmatpush1.msra.mxu0 0.0
    %2038 = vmatprep.subr.mxu0 0.0
    %2039 = vmatpush1.msra.mxu0 0.0
    %2040 = vmatprep.subr.mxu0 0.0
    %2041 = vmatpush1.msra.mxu0 0.0
    %2042 = vmatprep.subr.mxu0 0.0
    %2043 = vmatpush1.msra.mxu0 0.0
    %2044 = vmatprep.subr.mxu0 0.0
    %2045 = vmatpush1.msra.mxu0 0.0
    %2046 = vmatprep.subr.mxu0 0.0
    %2047 = vmatpush1.msra.mxu0 %v27
    %2048 = vmatprep.subr.mxu0 0.0
    %2049 = vmatpush1.msra.mxu0 %v26
    %2050 = vmatprep.subr.mxu0 0.0
    %2051 = vmatpush1.msra.mxu0 %v25
    %2052 = vmatprep.subr.mxu0 0.0
    %2053 = vmatpush1.msra.mxu0 %v24
    %2054 = vmatprep.subr.mxu0 0.0
    %2055 = vmatpush2.msra.mxu0 0.0
    %2056 = vmatprep.subr.mxu0 0.0
    %2057 = vmatpush2.msra.mxu0 0.0
    %2058 = vmatprep.subr.mxu0 0.0
    %2059 = vmatpush2.msra.mxu0 0.0
    %2060 = vmatprep.subr.mxu0 0.0
    %2061 = vmatpush2.msra.mxu0 0.0
    %2062 = vmatprep.subr.mxu0 0.0
    %2063 = vmatpush2.msra.mxu0 0.0
    %2064 = vmatprep.subr.mxu0 0.0
    %2065 = vmatpush2.msra.mxu0 0.0
    %2066 = vmatprep.subr.mxu0 0.0
    %2067 = vmatpush2.msra.mxu0 0.0
    %2068 = vmatprep.subr.mxu0 0.0
    %2069 = vmatpush2.msra.mxu0 0.0
    %2070 = vmatprep.subr.mxu0 0.0
    %2071 = vmatpush2.msra.mxu0 0.0
    %2072 = vmatprep.subr.mxu0 0.0
    %2073 = vmatpush2.msra.mxu0 0.0
    %2074 = vmatprep.subr.mxu0 0.0
    %2075 = vmatpush2.msra.mxu0 0.0
    %2076 = vmatprep.subr.mxu0 0.0
    %2077 = vmatpush2.msra.mxu0 0.0
    %2078 = vmatprep.subr.mxu0 0.0
    %2079 = vmatpush2.msra.mxu0 0.0
    %2080 = vmatprep.subr.mxu0 0.0
    %2081 = vmatpush2.msra.mxu0 0.0
    %2082 = vmatprep.subr.mxu0 0.0
    %2083 = vmatpush2.msra.mxu0 0.0
    %2084 = vmatprep.subr.mxu0 0.0
    %2085 = vmatpush2.msra.mxu0 0.0
    %2086 = vmatprep.mubr.f32.mxu0 0.0
    %2087 = vmatmul.mubr.f32.gmra.mxu0 %v2017
    %v2088 = vpop.f32.mrf.mxu0
    %v2089 = vadd.f32 %v2015, %v2088
    %v2090 = vpop.f32.mrf.mxu0
    %2091 = vmatprep.mubr.f32.mxu0 0.0
    %2092 = vmatmul.mubr.f32.gmra.mxu0 %v2020
    %v2093 = vpop.f32.mrf.mxu0
    %v2094 = vadd.f32 %v2015, %v2093
    %v2095 = vpop.f32.mrf.mxu0
    %2096 = vdwg.mxu0
    %v2097 = vmax.f32 %v2089, 0.0
    %v2098 = vmax.f32 %v2094, 0.0
    %v2099 = vlaneseq
    %v2100 = vshrl.u32 %v2099, 7
    %v2101 = vsub.s32 3, %v2100
    %v2102 = vrot.slane %v28, %v2101
    %vm2103 = vcmask 785408
    %v2105 = vsel %vm2103, %v2097, 0
    %v2108 = vsel %vm2103, %v2098, 0
    %2110 = vmatprep.subr.mxu0 0.0
    %2111 = vmatpush1.msra.mxu0 0.0
    %2112 = vmatprep.subr.mxu0 0.0
    %2113 = vmatpush1.msra.mxu0 0.0
    %2114 = vmatprep.subr.mxu0 0.0
    %2115 = vmatpush1.msra.mxu0 0.0
    %2116 = vmatprep.subr.mxu0 0.0
    %2117 = vmatpush1.msra.mxu0 0.0
    %2118 = vmatprep.subr.mxu0 0.0
    %2119 = vmatpush1.msra.mxu0 %v44
    %2120 = vmatprep.subr.mxu0 0.0
    %2121 = vmatpush1.msra.mxu0 %v43
    %2122 = vmatprep.subr.mxu0 0.0
    %2123 = vmatpush1.msra.mxu0 %v42
    %2124 = vmatprep.subr.mxu0 0.0
    %2125 = vmatpush1.msra.mxu0 %v41
    %2126 = vmatprep.subr.mxu0 0.0
    %2127 = vmatpush1.msra.mxu0 %v40
    %2128 = vmatprep.subr.mxu0 0.0
    %2129 = vmatpush1.msra.mxu0 %v39
    %2130 = vmatprep.subr.mxu0 0.0
    %2131 = vmatpush1.msra.mxu0 %v38
    %2132 = vmatprep.subr.mxu0 0.0
    %2133 = vmatpush1.msra.mxu0 %v37
    %2134 = vmatprep.subr.mxu0 0.0
    %2135 = vmatpush1.msra.mxu0 %v36
    %2136 = vmatprep.subr.mxu0 0.0
    %2137 = vmatpush1.msra.mxu0 %v35
    %2138 = vmatprep.subr.mxu0 0.0
    %2139 = vmatpush1.msra.mxu0 %v34
    %2140 = vmatprep.subr.mxu0 0.0
    %2141 = vmatpush1.msra.mxu0 %v33
    %2142 = vmatprep.subr.mxu0 0.0
    %2143 = vmatpush2.msra.mxu0 0.0
    %2144 = vmatprep.subr.mxu0 0.0
    %2145 = vmatpush2.msra.mxu0 0.0
    %2146 = vmatprep.subr.mxu0 0.0
    %2147 = vmatpush2.msra.mxu0 0.0
    %2148 = vmatprep.subr.mxu0 0.0
    %2149 = vmatpush2.msra.mxu0 0.0
    %2150 = vmatprep.subr.mxu0 0.0
    %2151 = vmatpush2.msra.mxu0 0.0
    %2152 = vmatprep.subr.mxu0 0.0
    %2153 = vmatpush2.msra.mxu0 0.0
    %2154 = vmatprep.subr.mxu0 0.0
    %2155 = vmatpush2.msra.mxu0 0.0
    %2156 = vmatprep.subr.mxu0 0.0
    %2157 = vmatpush2.msra.mxu0 0.0
    %2158 = vmatprep.subr.mxu0 0.0
    %2159 = vmatpush2.msra.mxu0 0.0
    %2160 = vmatprep.subr.mxu0 0.0
    %2161 = vmatpush2.msra.mxu0 0.0
    %2162 = vmatprep.subr.mxu0 0.0
    %2163 = vmatpush2.msra.mxu0 0.0
    %2164 = vmatprep.subr.mxu0 0.0
    %2165 = vmatpush2.msra.mxu0 0.0
    %2166 = vmatprep.subr.mxu0 0.0
    %2167 = vmatpush2.msra.mxu0 0.0
    %2168 = vmatprep.subr.mxu0 0.0
    %2169 = vmatpush2.msra.mxu0 0.0
    %2170 = vmatprep.subr.mxu0 0.0
    %2171 = vmatpush2.msra.mxu0 0.0
    %2172 = vmatprep.subr.mxu0 0.0
    %2173 = vmatpush2.msra.mxu0 0.0
    %2174 = vmatprep.mubr.f32.mxu0 0.0
    %2175 = vmatmul.mubr.f32.gmra.mxu0 %v2105
    %v2176 = vpop.f32.mrf.mxu0
    %v2177 = vadd.f32 %v2102, %v2176
    %v2178 = vpop.f32.mrf.mxu0
    %2179 = vmatprep.mubr.f32.mxu0 0.0
    %2180 = vmatmul.mubr.f32.gmra.mxu0 %v2108
    %v2181 = vpop.f32.mrf.mxu0
    %v2182 = vadd.f32 %v2102, %v2181
    %v2183 = vpop.f32.mrf.mxu0
    %2184 = vdwg.mxu0
    %v2185 = vadd.f32 %v2010, %v2177
    %v2186 = vadd.f32 %v2011, %v2182
    %v2187 = vsel %vm59, %v2185, 0.0
    %2188 = vadd.xlane.f32.xlu0 %v2187
    %v2189 = vpop.xlane.xlu0 %2188
    %v2190 = vsel %vm59, %v2186, 0.0
    %2191 = vadd.xlane.f32.xlu0 %v2190
    %v2192 = vpop.xlane.xlu0 %2191
    %v2193 = vmul.f32 %v2189, %v1979
    %v2194 = vmul.f32 %v2192, %v1979
    %v2195 = vsub.f32 %v2185, %v2193
    %v2196 = vsub.f32 %v2186, %v2194
    %v2197 = vmul.f32 %v2195, %v2195
    %v2198 = vmul.f32 %v2196, %v2196
    %v2199 = vsel %vm59, %v2197, 0.0
    %2200 = vadd.xlane.f32.xlu0 %v2199
    %v2201 = vpop.xlane.xlu0 %2200
    %v2202 = vsel %vm59, %v2198, 0.0
    %2203 = vadd.xlane.f32.xlu0 %v2202
    %v2204 = vpop.xlane.xlu0 %2203
    %v2205 = vmul.f32 %v2201, %v1979
    %v2206 = vmul.f32 %v2204, %v1979
    %v2207 = vadd.f32 %v2205, 1e-05
    %v2208 = vadd.f32 %v2206, 1e-05
    %v2209 = vrsqrt.pop %v2207
    %v2210 = vrsqrt.pop %v2208
    %v2211 = vmul.f32 %v2195, %v2209
    %v2212 = vmul.f32 %v2196, %v2210
    %v2213 = vlaneseq
    %v2214 = vshrl.u32 %v2213, 7
    %v2215 = vsub.s32 6, %v2214
    %v2216 = vrot.slane %v28, %v2215
    %v2217 = vmul.f32 %v2211, %v2216
    %v2218 = vmul.f32 %v2212, %v2216
    %v2219 = vlaneseq
    %v2220 = vshrl.u32 %v2219, 7
    %v2221 = vsub.s32 7, %v2220
    %v2222 = vrot.slane %v28, %v2221
    %v2223 = vadd.f32 %v2217, %v2222
    %v2224 = vadd.f32 %v2218, %v2222
    %2225 = vst.msk [vmem:[%s4] sm:$0xff] %vm59, %v2223
    %2226 = vst.msk [vmem:[%s4 + $0x8] sm:$0xff] %vm59, %v2224
    // Predicated region
    $region18: #{decoder_layer_forward.1} parent=1 // pred_check
      _
    $region19: #{decoder_layer_forward.1} parent=1 // pred_check_branch
      %2228 = sbr.rel (0) target = $region21
    $region20: #{decoder_layer_forward.1} parent=1 // pred_region
      _
    $region21: #{decoder_layer_forward.1} parent=1 // pred_fallthru
      _
    // Predicated region
    $region22: #{decoder_layer_forward.1} parent=1 // pred_check
      _
    $region23: #{decoder_layer_forward.1} parent=1 // pred_check_branch
      %2230 = sbr.rel (0) target = $region25
    $region24: #{decoder_layer_forward.1} parent=1 // pred_region
      %s2232 = ssub.s32 256, 256
      %2233 = vsyncadd [#allocation3], %s2232
      %s2234 = sshll.u32 [#allocation2], 4
      %s2235 = int_to_ptr.vmem [resolvable:$true] %s2234
      %2240 = dma.vmem_to_hbm [thread:$0]  %s2235, 256, %s5, [#allocation3], 128, 128, 8
    $region25: #{decoder_layer_forward.1} parent=1 // pred_fallthru
      _
    // Predicated region
    $region26: #{decoder_layer_forward.1} parent=1 // pred_check
      _
    $region27: #{decoder_layer_forward.1} parent=1 // pred_check_branch
      %2242 = sbr.rel (0) target = $region29
    $region28: #{decoder_layer_forward.1} parent=1 // pred_region
      _
    $region29: #{decoder_layer_forward.1} parent=1 // pred_fallthru
      _
    // Predicated region
    $region30: #{decoder_layer_forward.1} parent=1 // pred_check
      _
    $region31: #{decoder_layer_forward.1} parent=1 // pred_check_branch
      %2244 = sbr.rel (0) target = $region33
    $region32: #{decoder_layer_forward.1} parent=1 // pred_region
      %2245 = dma.done [#allocation3], 256
    $region33: #{decoder_layer_forward.1} parent=1 // pred_fallthru
      _
    %2246 = vsyncpa [#allocation3], 1

</llo_original>
